<compile_context>
chip_gen: v7x
topology: tpu7x:2x2x1
jax: 0.10.0
libtpu: 0.0.40
codegen_flags: <defaults>
</compile_context>

<pallas_src>
import functools

import jax
import jax.numpy as jnp
from jax.experimental import pallas as pl
from jax.experimental.pallas import tpu as pltpu


# ----------------------------------------------------------------------------
# Single fused kernel: Importation MLP  +  transfer matrix  +  ABM rollout.
# ----------------------------------------------------------------------------
def network_kernel(param_ref,                       # SMEM (18,)
                   featT_ref,                       # (F, NP)  features^T, zero-padded lanes
                   w1T_ref, b1_ref,                 # (128, F), (128, 1)
                   w2T_ref, b2_ref,                 # (128, 128), (128, 1)  (BN folded)
                   w3T_ref, b3_ref,                 # (64, 128), (64, 1)    (BN folded)
                   w45_ref, b45_ref,                # (1, 64), (1, 1)       (fc4∘fc5 folded)
                   imp_ref,                         # (T, NP)  ImportationIndex (padded)
                   z_ref,                           # (1, NP)  std-normal draw (padded)
                   AsT_ref,                         # (T, NP, NP)  A[t]^T (zero-padded)
                   states_out, prob_out,            # (T, NP), (1, NP)
                   *, P, H, L, T, NP):
    f32 = jnp.float32

    # ---------------- Importation MLP (batch on lanes, NP lanes) ----------------
    h = jnp.dot(w1T_ref[...], featT_ref[...], preferred_element_type=f32) + b1_ref[...]
    h = jnp.dot(w2T_ref[...], h, preferred_element_type=f32) + b2_ref[...]
    h = jnp.maximum(h, 0.0)                         # ReLU; Dropout = identity (eval)
    h = jnp.dot(w3T_ref[...], h, preferred_element_type=f32) + b3_ref[...]
    h = jnp.maximum(h, 0.0)                         # ReLU; Dropout = identity (eval)
    o = jnp.dot(w45_ref[...], h, preferred_element_type=f32) + b45_ref[...]   # (1, NP)

    # Probability stays in vregs; lanes >= P are 1.0 so non-patch rows are
    # multiplied by 1 during the rollout (sigmoid already in [0,1]; no clip).
    lane = jax.lax.broadcasted_iota(jnp.int32, (1, NP), 1)
    is_patch = lane < P
    prob_full = jnp.where(is_patch, jax.nn.sigmoid(o), 1.0)       # (1, NP)
    prob_out[...] = prob_full                        # single unmasked lane-dense store

    # ---------------- Hoisted scalars & masks (computed once) ----------------
    mu_init = param_ref[0]
    sigma_init = param_ref[1]
    alpha = param_ref[4]
    beta = param_ref[5]
    delta = param_ref[6]
    phi_p = param_ref[7]
    phi_h = param_ref[8]
    phi_l = param_ref[9]
    t_pp = param_ref[10]
    t_ph = param_ref[11]
    t_pl = param_ref[12]
    t_hp = param_ref[13]
    t_hh = param_ref[14]
    t_hl = param_ref[15]
    t_lp = param_ref[16]
    t_lh = param_ref[17]

    # diag(phi) folded into a per-lane FMA on the loads vector.
    phi_row = jnp.where(lane < P, phi_p,
                        jnp.where(lane < P + H, phi_h, phi_l)).astype(f32)   # (1, NP)

    ri = jax.lax.broadcasted_iota(jnp.int32, (NP, NP), 0)
    ci = jax.lax.broadcasted_iota(jnp.int32, (NP, NP), 1)
    fp_i = (ri < P).astype(f32)
    fh_i = ((ri >= P) & (ri < P + H)).astype(f32)
    fl_i = (ri >= P + H).astype(f32)
    fp_j = (ci < P).astype(f32)
    fh_j = ((ci >= P) & (ci < P + H)).astype(f32)
    fl_j = (ci >= P + H).astype(f32)

    # TODO(synk): `transfer_matrix` is not defined in the provided source; this is a
    # block-structured stand-in R[t] = diag(phi_type) + tau[src_type, dst_type] * A[t],
    # used directly in transposed row form  loads_row @ R[t]^T.
    tauT = (fp_i * (t_pp * fp_j + t_ph * fh_j + t_pl * fl_j)
            + fh_i * (t_hp * fp_j + t_hh * fh_j + t_hl * fl_j)
            + fl_i * (t_lp * fp_j + t_lh * fh_j))                   # (NP, NP), hoisted

    # ---------------- ABM rollout, fully unrolled over T (T small & static) ----
    # The serial states/loads dependency chain stays in vregs; the per-step rows
    # are carried in vregs and stored once as a single (T, NP) block at the end.
    rows = []
    imp0 = imp_ref[pl.ds(0, 1), :]                  # (1, NP) ImportationIndex[0]
    states = imp0 * prob_full                       # states_init (unclamped, as in torch)
    loads = states * imp0 * (mu_init + sigma_init * z_ref[...])
    rows.append(states)
    for t in range(1, T):
        imp_t = imp_ref[pl.ds(t, 1), :] * prob_full
        new_full = (1.0 - delta) * states + beta * loads * (1.0 - states) + imp_t
        # ABM.simulate: only the first P rows are updated (and clamped there)
        states_upd = jnp.where(is_patch, jnp.clip(new_full, 0.0, 1.0), states)
        # loads = R[t] @ loads_prev + alpha*states  ->  row form with diag(phi) as FMA
        loads = (jnp.dot(loads, tauT * AsT_ref[t], preferred_element_type=f32)
                 + phi_row * loads + alpha * states_upd)
        # Network.forward clamps the whole state vector before storing / carrying
        states = jnp.clip(states_upd, 0.0, 1.0)
        rows.append(states)
    states_out[...] = jnp.concatenate(rows, axis=0)  # one coalesced (T, NP) store


def fused_forward(parameter, featT_p, mlp_params, imp_p, z_p, AsT_p, P, H, L, T, NP):
    kernel = functools.partial(network_kernel, P=P, H=H, L=L, T=T, NP=NP)
    vmem = pl.BlockSpec(memory_space=pltpu.MemorySpace.VMEM)
    smem = pl.BlockSpec(memory_space=pltpu.MemorySpace.SMEM)
    states_all, prob_full = pl.pallas_call(
        kernel,
        out_shape=(jax.ShapeDtypeStruct((T, NP), jnp.float32),
                   jax.ShapeDtypeStruct((1, NP), jnp.float32)),
        in_specs=[smem] + [vmem] * 12,
        out_specs=(vmem, vmem),
    )(parameter, featT_p, *mlp_params, imp_p, z_p, AsT_p)
    return states_all, prob_full


# ----------------------------------------------------------------------------
# Plain-JAX glue: Parameter head, host-side weight folding, wrapper.
# ----------------------------------------------------------------------------
def parameter_forward(para):
    low = jnp.array([0, 0, 0, 0, 0, 0, 0, 0.9, 0.9, 0.9,
                     0, 0, 0, 0, 0, 0, 0, 0], jnp.float32)
    up = jnp.array([10, 10, 10, 10, 2, 0.02, 0.1, 1, 1, 1,
                    0.02, 0.02, 0.02, 0.02, 0.002, 0.02, 0.02, 0.01], jnp.float32)
    return low + (up - low) * jax.nn.sigmoid(para)


def init_mlp_params(key, feature_dim):
    """Torch-default Linear init; BN (eval) and fc4∘fc5 folded; weights transposed
    so the MLP runs with the node batch on lanes inside the kernel."""
    dims = [(feature_dim, 128), (128, 128), (128, 64), (64, 16), (16, 1)]
    params = []
    keys = jax.random.split(key, len(dims) * 2)
    for i, (fin, fout) in enumerate(dims):
        bound = 1.0 / jnp.sqrt(fin)
        w = jax.random.uniform(keys[2 * i], (fin, fout), jnp.float32, -bound, bound)
        b = jax.random.uniform(keys[2 * i + 1], (1, fout), jnp.float32, -bound, bound)
        params.append((w, b))
    (w1, b1), (w2, b2), (w3, b3), (w4, b4), (w5, b5) = params

    # BatchNorm1d eval-mode (running mean=0, var=1, gamma=1, beta=0) folded into fc2/fc3.
    eps = 1e-5
    s2 = jnp.full((128,), 1.0 / jnp.sqrt(1.0 + eps), jnp.float32)
    s3 = jnp.full((64,), 1.0 / jnp.sqrt(1.0 + eps), jnp.float32)
    w2f = w2 * s2[None, :]
    b2f = b2 * s2[None, :]
    w3f = w3 * s3[None, :]
    b3f = b3 * s3[None, :]

    # fc4 ∘ fc5 algebraic fold (no nonlinearity between them).
    w45 = w4 @ w5                  # (64, 1)
    b45 = b4 @ w5 + b5             # (1, 1)

    return (w1.T, b1.T,            # (128, F), (128, 1)
            w2f.T, b2f.T,          # (128, 128), (128, 1)
            w3f.T, b3f.T,          # (64, 128), (64, 1)
            w45.T, b45)            # (1, 64), (1, 1)


def network_forward(features, mlp_params, para, As, imp_index, z_row, P, H, L):
    T, N = imp_index.shape
    NP = max(128, ((N + 127) // 128) * 128)             # lane-dense width

    parameter = parameter_forward(para)                 # (18,)

    # Zero-pad everything to NP lanes (pure layout plumbing; keeps every store
    # inside the kernel unmasked and lets prob_full live entirely in vregs).
    F = features.shape[1]
    featT_p = jnp.zeros((F, NP), jnp.float32).at[:, :P].set(features.T)
    imp_p = jnp.zeros((T, NP), jnp.float32).at[:, :N].set(imp_index)
    z_p = jnp.zeros((1, NP), jnp.float32).at[:, :N].set(z_row)
    # TODO(synk): at large N, produce A already transposed upstream instead of
    # paying a full (T,N,N) HBM read+write here (negligible at toy size).
    AsT = jnp.transpose(As, (0, 2, 1))
    AsT_p = jnp.zeros((T, NP, NP), jnp.float32).at[:, :N, :N].set(AsT)

    states_all, prob_full = fused_forward(parameter, featT_p, mlp_params,
                                          imp_p, z_p, AsT_p, P, H, L, T, NP)
    probability = prob_full[0, :P].reshape(P, 1)         # torch layout (P, 1)
    # Equivalent of states_all[:P, :].T in the torch (N, T) layout -> (T, P)
    return states_all[:, :P], probability, parameter


if __name__ == "__main__":
    P, H, L = 8, 4, 4
    N = P + H + L
    T = 6
    feature_dim = 32

    root = jax.random.PRNGKey(0)
    k_feat, k_adj, k_imp, k_para, k_mlp, k_norm = jax.random.split(root, 6)

    features = jax.random.normal(k_feat, (P, feature_dim), jnp.float32)
    As = jax.random.uniform(k_adj, (T, N, N), jnp.float32)
    imp_index = (jax.random.uniform(k_imp, (T, N)) > 0.6).astype(jnp.float32)
    para = jax.random.uniform(k_para, (18,), jnp.float32)
    mlp_params = init_mlp_params(k_mlp, feature_dim)
    z_row = jax.random.normal(k_norm, (1, N), jnp.float32)  # stands in for torch.normal

    states_TP, probability, parameter = network_forward(
        features, mlp_params, para, As, imp_index, z_row, P, H, L)

    jax.block_until_ready((states_TP, probability, parameter))
    assert states_TP.shape == (T, P)
    assert probability.shape == (P, 1)
    assert parameter.shape == (18,)
    assert bool(jnp.all(jnp.isfinite(states_TP)))
    assert bool(jnp.all((probability >= 0.0) & (probability <= 1.0)))
    print("KERNEL_OK")
</pallas_src>

<mosaic_0001>
module attributes {stable_mosaic.version = 11 : i64} {
  func.func @network_kernel(%arg0: memref<18xf32, #tpu.memory_space<smem>>, %arg1: memref<32x128xf32, #tpu.memory_space<vmem>>, %arg2: memref<128x32xf32, #tpu.memory_space<vmem>>, %arg3: memref<128x1xf32, #tpu.memory_space<vmem>>, %arg4: memref<128x128xf32, #tpu.memory_space<vmem>>, %arg5: memref<128x1xf32, #tpu.memory_space<vmem>>, %arg6: memref<64x128xf32, #tpu.memory_space<vmem>>, %arg7: memref<64x1xf32, #tpu.memory_space<vmem>>, %arg8: memref<1x64xf32, #tpu.memory_space<vmem>>, %arg9: memref<1x1xf32, #tpu.memory_space<vmem>>, %arg10: memref<6x128xf32, #tpu.memory_space<vmem>>, %arg11: memref<1x128xf32, #tpu.memory_space<vmem>>, %arg12: memref<6x128x128xf32, #tpu.memory_space<vmem>>, %arg13: memref<6x128xf32, #tpu.memory_space<vmem>>, %arg14: memref<1x128xf32, #tpu.memory_space<vmem>>) attributes {dimension_semantics = [], scalar_prefetch = 0 : i64, scratch_operands = 0 : i64, tpu.core_type = #tpu.core_type<tc>} {
    %c0 = arith.constant 0 : index
    %c0_0 = arith.constant 0 : index
    %0 = vector.load %arg2[%c0, %c0_0] : memref<128x32xf32, #tpu.memory_space<vmem>>, vector<128x32xf32>
    %c0_1 = arith.constant 0 : index
    %c0_2 = arith.constant 0 : index
    %1 = vector.load %arg1[%c0_1, %c0_2] : memref<32x128xf32, #tpu.memory_space<vmem>>, vector<32x128xf32>
    %cst = arith.constant dense<0.000000e+00> : vector<128x128xf32>
    %2 = tpu.matmul %0, %1, %cst {dimension_numbers = #tpu.dot_dimension_numbers<[1], [0], [0], [1], [0, 0, 1, 1], [], []>} : vector<128x32xf32>, vector<32x128xf32>, vector<128x128xf32> -> vector<128x128xf32>
    %c0_3 = arith.constant 0 : index
    %c0_4 = arith.constant 0 : index
    %3 = vector.load %arg3[%c0_3, %c0_4] : memref<128x1xf32, #tpu.memory_space<vmem>>, vector<128x1xf32>
    %4 = vector.broadcast %3 : vector<128x1xf32> to vector<128x128xf32>
    %5 = arith.addf %2, %4 : vector<128x128xf32>
    %c0_5 = arith.constant 0 : index
    %c0_6 = arith.constant 0 : index
    %6 = vector.load %arg4[%c0_5, %c0_6] : memref<128x128xf32, #tpu.memory_space<vmem>>, vector<128x128xf32>
    %cst_7 = arith.constant dense<0.000000e+00> : vector<128x128xf32>
    %7 = tpu.matmul %6, %5, %cst_7 {dimension_numbers = #tpu.dot_dimension_numbers<[1], [0], [0], [1], [0, 0, 1, 1], [], []>} : vector<128x128xf32>, vector<128x128xf32>, vector<128x128xf32> -> vector<128x128xf32>
    %c0_8 = arith.constant 0 : index
    %c0_9 = arith.constant 0 : index
    %8 = vector.load %arg5[%c0_8, %c0_9] : memref<128x1xf32, #tpu.memory_space<vmem>>, vector<128x1xf32>
    %9 = vector.broadcast %8 : vector<128x1xf32> to vector<128x128xf32>
    %10 = arith.addf %7, %9 : vector<128x128xf32>
    %cst_10 = arith.constant 0.000000e+00 : f32
    %11 = vector.broadcast %cst_10 : f32 to vector<128x128xf32>
    %12 = arith.maximumf %10, %11 : vector<128x128xf32>
    %c0_11 = arith.constant 0 : index
    %c0_12 = arith.constant 0 : index
    %13 = vector.load %arg6[%c0_11, %c0_12] : memref<64x128xf32, #tpu.memory_space<vmem>>, vector<64x128xf32>
    %cst_13 = arith.constant dense<0.000000e+00> : vector<64x128xf32>
    %14 = tpu.matmul %13, %12, %cst_13 {dimension_numbers = #tpu.dot_dimension_numbers<[1], [0], [0], [1], [0, 0, 1, 1], [], []>} : vector<64x128xf32>, vector<128x128xf32>, vector<64x128xf32> -> vector<64x128xf32>
    %c0_14 = arith.constant 0 : index
    %c0_15 = arith.constant 0 : index
    %15 = vector.load %arg7[%c0_14, %c0_15] : memref<64x1xf32, #tpu.memory_space<vmem>>, vector<64x1xf32>
    %16 = vector.broadcast %15 : vector<64x1xf32> to vector<64x128xf32>
    %17 = arith.addf %14, %16 : vector<64x128xf32>
    %cst_16 = arith.constant 0.000000e+00 : f32
    %18 = vector.broadcast %cst_16 : f32 to vector<64x128xf32>
    %19 = arith.maximumf %17, %18 : vector<64x128xf32>
    %c0_17 = arith.constant 0 : index
    %c0_18 = arith.constant 0 : index
    %20 = vector.load %arg8[%c0_17, %c0_18] : memref<1x64xf32, #tpu.memory_space<vmem>>, vector<1x64xf32>
    %cst_19 = arith.constant dense<0.000000e+00> : vector<1x128xf32>
    %21 = tpu.matmul %20, %19, %cst_19 {dimension_numbers = #tpu.dot_dimension_numbers<[1], [0], [0], [1], [0, 0, 1, 1], [], []>} : vector<1x64xf32>, vector<64x128xf32>, vector<1x128xf32> -> vector<1x128xf32>
    %c0_20 = arith.constant 0 : index
    %c0_21 = arith.constant 0 : index
    %22 = vector.load %arg9[%c0_20, %c0_21] : memref<1x1xf32, #tpu.memory_space<vmem>>, vector<1x1xf32>
    %23 = vector.broadcast %22 : vector<1x1xf32> to vector<1x128xf32>
    %24 = arith.addf %21, %23 : vector<1x128xf32>
    %25 = tpu.iota {dimensions = array<i32: 1>} : vector<1x128xi32>
    %c8_i32 = arith.constant 8 : i32
    %26 = vector.broadcast %c8_i32 : i32 to vector<1x128xi32>
    %27 = arith.cmpi slt, %25, %26 : vector<1x128xi32>
    %28 = arith.negf %24 : vector<1x128xf32>
    %29 = math.exp %28 : vector<1x128xf32>
    %cst_22 = arith.constant 1.000000e+00 : f32
    %30 = vector.broadcast %cst_22 : f32 to vector<1x128xf32>
    %31 = arith.addf %30, %29 : vector<1x128xf32>
    %32 = arith.divf %30, %31 : vector<1x128xf32>
    %cst_23 = arith.constant 1.000000e+00 : f32
    %33 = vector.broadcast %cst_23 : f32 to vector<1x128xf32>
    %34 = arith.select %27, %32, %33 : vector<1x128xi1>, vector<1x128xf32>
    %c0_24 = arith.constant 0 : index
    %c0_25 = arith.constant 0 : index
    %35 = vector.load %arg14[%c0_24, %c0_25] : memref<1x128xf32, #tpu.memory_space<vmem>>, vector<1x128xf32>
    tpu.vector_store %arg14[%c0_24, %c0_25], %34 {strides = array<i32>} : memref<1x128xf32, #tpu.memory_space<vmem>>, vector<1x128xf32>,
    %c0_26 = arith.constant 0 : index
    %36 = memref.load %arg0[%c0_26] : memref<18xf32, #tpu.memory_space<smem>>
    %c1 = arith.constant 1 : index
    %37 = memref.load %arg0[%c1] : memref<18xf32, #tpu.memory_space<smem>>
    %c4 = arith.constant 4 : index
    %38 = memref.load %arg0[%c4] : memref<18xf32, #tpu.memory_space<smem>>
    %c5 = arith.constant 5 : index
    %39 = memref.load %arg0[%c5] : memref<18xf32, #tpu.memory_space<smem>>
    %c6 = arith.constant 6 : index
    %40 = memref.load %arg0[%c6] : memref<18xf32, #tpu.memory_space<smem>>
    %c7 = arith.constant 7 : index
    %41 = memref.load %arg0[%c7] : memref<18xf32, #tpu.memory_space<smem>>
    %c8 = arith.constant 8 : index
    %42 = memref.load %arg0[%c8] : memref<18xf32, #tpu.memory_space<smem>>
    %c9 = arith.constant 9 : index
    %43 = memref.load %arg0[%c9] : memref<18xf32, #tpu.memory_space<smem>>
    %c10 = arith.constant 10 : index
    %44 = memref.load %arg0[%c10] : memref<18xf32, #tpu.memory_space<smem>>
    %c11 = arith.constant 11 : index
    %45 = memref.load %arg0[%c11] : memref<18xf32, #tpu.memory_space<smem>>
    %c12 = arith.constant 12 : index
    %46 = memref.load %arg0[%c12] : memref<18xf32, #tpu.memory_space<smem>>
    %c13 = arith.constant 13 : index
    %47 = memref.load %arg0[%c13] : memref<18xf32, #tpu.memory_space<smem>>
    %c14 = arith.constant 14 : index
    %48 = memref.load %arg0[%c14] : memref<18xf32, #tpu.memory_space<smem>>
    %c15 = arith.constant 15 : index
    %49 = memref.load %arg0[%c15] : memref<18xf32, #tpu.memory_space<smem>>
    %c16 = arith.constant 16 : index
    %50 = memref.load %arg0[%c16] : memref<18xf32, #tpu.memory_space<smem>>
    %c17 = arith.constant 17 : index
    %51 = memref.load %arg0[%c17] : memref<18xf32, #tpu.memory_space<smem>>
    %c8_i32_27 = arith.constant 8 : i32
    %52 = vector.broadcast %c8_i32_27 : i32 to vector<1x128xi32>
    %53 = arith.cmpi slt, %25, %52 : vector<1x128xi32>
    %c12_i32 = arith.constant 12 : i32
    %54 = vector.broadcast %c12_i32 : i32 to vector<1x128xi32>
    %55 = arith.cmpi slt, %25, %54 : vector<1x128xi32>
    %56 = vector.broadcast %42 : f32 to vector<1x128xf32>
    %57 = vector.broadcast %43 : f32 to vector<1x128xf32>
    %58 = arith.select %55, %56, %57 : vector<1x128xi1>, vector<1x128xf32>
    %59 = vector.broadcast %41 : f32 to vector<1x128xf32>
    %60 = arith.select %53, %59, %58 : vector<1x128xi1>, vector<1x128xf32>
    %61 = tpu.iota {dimensions = array<i32: 0>} : vector<128x128xi32>
    %62 = tpu.iota {dimensions = array<i32: 1>} : vector<128x128xi32>
    %c8_i32_28 = arith.constant 8 : i32
    %63 = vector.broadcast %c8_i32_28 : i32 to vector<128x128xi32>
    %64 = arith.cmpi slt, %61, %63 : vector<128x128xi32>
    %65 = arith.extui %64 : vector<128x128xi1> to vector<128x128xi32>
    %66 = arith.sitofp %65 : vector<128x128xi32> to vector<128x128xf32>
    %c8_i32_29 = arith.constant 8 : i32
    %67 = vector.broadcast %c8_i32_29 : i32 to vector<128x128xi32>
    %68 = arith.cmpi sge, %61, %67 : vector<128x128xi32>
    %c12_i32_30 = arith.constant 12 : i32
    %69 = vector.broadcast %c12_i32_30 : i32 to vector<128x128xi32>
    %70 = arith.cmpi slt, %61, %69 : vector<128x128xi32>
    %71 = arith.andi %68, %70 : vector<128x128xi1>
    %72 = arith.extui %71 : vector<128x128xi1> to vector<128x128xi32>
    %73 = arith.sitofp %72 : vector<128x128xi32> to vector<128x128xf32>
    %c12_i32_31 = arith.constant 12 : i32
    %74 = vector.broadcast %c12_i32_31 : i32 to vector<128x128xi32>
    %75 = arith.cmpi sge, %61, %74 : vector<128x128xi32>
    %76 = arith.extui %75 : vector<128x128xi1> to vector<128x128xi32>
    %77 = arith.sitofp %76 : vector<128x128xi32> to vector<128x128xf32>
    %c8_i32_32 = arith.constant 8 : i32
    %78 = vector.broadcast %c8_i32_32 : i32 to vector<128x128xi32>
    %79 = arith.cmpi slt, %62, %78 : vector<128x128xi32>
    %80 = arith.extui %79 : vector<128x128xi1> to vector<128x128xi32>
    %81 = arith.sitofp %80 : vector<128x128xi32> to vector<128x128xf32>
    %c8_i32_33 = arith.constant 8 : i32
    %82 = vector.broadcast %c8_i32_33 : i32 to vector<128x128xi32>
    %83 = arith.cmpi sge, %62, %82 : vector<128x128xi32>
    %c12_i32_34 = arith.constant 12 : i32
    %84 = vector.broadcast %c12_i32_34 : i32 to vector<128x128xi32>
    %85 = arith.cmpi slt, %62, %84 : vector<128x128xi32>
    %86 = arith.andi %83, %85 : vector<128x128xi1>
    %87 = arith.extui %86 : vector<128x128xi1> to vector<128x128xi32>
    %88 = arith.sitofp %87 : vector<128x128xi32> to vector<128x128xf32>
    %c12_i32_35 = arith.constant 12 : i32
    %89 = vector.broadcast %c12_i32_35 : i32 to vector<128x128xi32>
    %90 = arith.cmpi sge, %62, %89 : vector<128x128xi32>
    %91 = arith.extui %90 : vector<128x128xi1> to vector<128x128xi32>
    %92 = arith.sitofp %91 : vector<128x128xi32> to vector<128x128xf32>
    %93 = vector.broadcast %44 : f32 to vector<128x128xf32>
    %94 = arith.mulf %93, %81 : vector<128x128xf32>
    %95 = vector.broadcast %45 : f32 to vector<128x128xf32>
    %96 = arith.mulf %95, %88 : vector<128x128xf32>
    %97 = arith.addf %94, %96 : vector<128x128xf32>
    %98 = vector.broadcast %46 : f32 to vector<128x128xf32>
    %99 = arith.mulf %98, %92 : vector<128x128xf32>
    %100 = arith.addf %97, %99 : vector<128x128xf32>
    %101 = arith.mulf %66, %100 : vector<128x128xf32>
    %102 = vector.broadcast %47 : f32 to vector<128x128xf32>
    %103 = arith.mulf %102, %81 : vector<128x128xf32>
    %104 = vector.broadcast %48 : f32 to vector<128x128xf32>
    %105 = arith.mulf %104, %88 : vector<128x128xf32>
    %106 = arith.addf %103, %105 : vector<128x128xf32>
    %107 = vector.broadcast %49 : f32 to vector<128x128xf32>
    %108 = arith.mulf %107, %92 : vector<128x128xf32>
    %109 = arith.addf %106, %108 : vector<128x128xf32>
    %110 = arith.mulf %73, %109 : vector<128x128xf32>
    %111 = arith.addf %101, %110 : vector<128x128xf32>
    %112 = vector.broadcast %50 : f32 to vector<128x128xf32>
    %113 = arith.mulf %112, %81 : vector<128x128xf32>
    %114 = vector.broadcast %51 : f32 to vector<128x128xf32>
    %115 = arith.mulf %114, %88 : vector<128x128xf32>
    %116 = arith.addf %113, %115 : vector<128x128xf32>
    %117 = arith.mulf %77, %116 : vector<128x128xf32>
    %118 = arith.addf %111, %117 : vector<128x128xf32>
    %c0_36 = arith.constant 0 : index
    %c0_37 = arith.constant 0 : index
    %119 = vector.load %arg10[%c0_36, %c0_37] : memref<6x128xf32, #tpu.memory_space<vmem>>, vector<1x128xf32>
    %120 = arith.mulf %119, %34 : vector<1x128xf32>
    %121 = arith.mulf %120, %119 : vector<1x128xf32>
    %c0_38 = arith.constant 0 : index
    %c0_39 = arith.constant 0 : index
    %122 = vector.load %arg11[%c0_38, %c0_39] : memref<1x128xf32, #tpu.memory_space<vmem>>, vector<1x128xf32>
    %123 = vector.broadcast %37 : f32 to vector<1x128xf32>
    %124 = arith.mulf %123, %122 : vector<1x128xf32>
    %125 = vector.broadcast %36 : f32 to vector<1x128xf32>
    %126 = arith.addf %125, %124 : vector<1x128xf32>
    %127 = arith.mulf %121, %126 : vector<1x128xf32>
    %c1_40 = arith.constant 1 : index
    %c0_41 = arith.constant 0 : index
    %128 = vector.load %arg10[%c1_40, %c0_41] : memref<6x128xf32, #tpu.memory_space<vmem>>, vector<1x128xf32>
    %129 = arith.mulf %128, %34 : vector<1x128xf32>
    %cst_42 = arith.constant 1.000000e+00 : f32
    %130 = arith.subf %cst_42, %40 : f32
    %131 = vector.broadcast %130 : f32 to vector<1x128xf32>
    %132 = arith.mulf %131, %120 : vector<1x128xf32>
    %133 = vector.broadcast %39 : f32 to vector<1x128xf32>
    %134 = arith.mulf %133, %127 : vector<1x128xf32>
    %cst_43 = arith.constant 1.000000e+00 : f32
    %135 = vector.broadcast %cst_43 : f32 to vector<1x128xf32>
    %136 = arith.subf %135, %120 : vector<1x128xf32>
    %137 = arith.mulf %134, %136 : vector<1x128xf32>
    %138 = arith.addf %132, %137 : vector<1x128xf32>
    %139 = arith.addf %138, %129 : vector<1x128xf32>
    %cst_44 = arith.constant 0.000000e+00 : f32
    %cst_45 = arith.constant 1.000000e+00 : f32
    %140 = vector.broadcast %cst_44 : f32 to vector<1x128xf32>
    %141 = arith.maximumf %140, %139 : vector<1x128xf32>
    %142 = vector.broadcast %cst_45 : f32 to vector<1x128xf32>
    %143 = arith.minimumf %142, %141 : vector<1x128xf32>
    %144 = arith.select %27, %143, %120 : vector<1x128xi1>, vector<1x128xf32>
    %c1_46 = arith.constant 1 : index
    %c0_47 = arith.constant 0 : index
    %c0_48 = arith.constant 0 : index
    %145 = vector.load %arg12[%c1_46, %c0_47, %c0_48] : memref<6x128x128xf32, #tpu.memory_space<vmem>>, vector<1x128x128xf32>
    %146 = vector.shape_cast %145 : vector<1x128x128xf32> to vector<128x128xf32>
    %147 = arith.mulf %118, %146 : vector<128x128xf32>
    %cst_49 = arith.constant dense<0.000000e+00> : vector<1x128xf32>
    %148 = tpu.matmul %127, %147, %cst_49 {dimension_numbers = #tpu.dot_dimension_numbers<[1], [0], [0], [1], [0, 0, 1, 1], [], []>} : vector<1x128xf32>, vector<128x128xf32>, vector<1x128xf32> -> vector<1x128xf32>
    %149 = arith.mulf %60, %127 : vector<1x128xf32>
    %150 = arith.addf %148, %149 : vector<1x128xf32>
    %151 = vector.broadcast %38 : f32 to vector<1x128xf32>
    %152 = arith.mulf %151, %144 : vector<1x128xf32>
    %153 = arith.addf %150, %152 : vector<1x128xf32>
    %cst_50 = arith.constant 0.000000e+00 : f32
    %cst_51 = arith.constant 1.000000e+00 : f32
    %154 = vector.broadcast %cst_50 : f32 to vector<1x128xf32>
    %155 = arith.maximumf %154, %144 : vector<1x128xf32>
    %156 = vector.broadcast %cst_51 : f32 to vector<1x128xf32>
    %157 = arith.minimumf %156, %155 : vector<1x128xf32>
    %c2 = arith.constant 2 : index
    %c0_52 = arith.constant 0 : index
    %158 = vector.load %arg10[%c2, %c0_52] : memref<6x128xf32, #tpu.memory_space<vmem>>, vector<1x128xf32>
    %159 = arith.mulf %158, %34 : vector<1x128xf32>
    %cst_53 = arith.constant 1.000000e+00 : f32
    %160 = arith.subf %cst_53, %40 : f32
    %161 = vector.broadcast %160 : f32 to vector<1x128xf32>
    %162 = arith.mulf %161, %157 : vector<1x128xf32>
    %163 = vector.broadcast %39 : f32 to vector<1x128xf32>
    %164 = arith.mulf %163, %153 : vector<1x128xf32>
    %cst_54 = arith.constant 1.000000e+00 : f32
    %165 = vector.broadcast %cst_54 : f32 to vector<1x128xf32>
    %166 = arith.subf %165, %157 : vector<1x128xf32>
    %167 = arith.mulf %164, %166 : vector<1x128xf32>
    %168 = arith.addf %162, %167 : vector<1x128xf32>
    %169 = arith.addf %168, %159 : vector<1x128xf32>
    %cst_55 = arith.constant 0.000000e+00 : f32
    %cst_56 = arith.constant 1.000000e+00 : f32
    %170 = vector.broadcast %cst_55 : f32 to vector<1x128xf32>
    %171 = arith.maximumf %170, %169 : vector<1x128xf32>
    %172 = vector.broadcast %cst_56 : f32 to vector<1x128xf32>
    %173 = arith.minimumf %172, %171 : vector<1x128xf32>
    %174 = arith.select %27, %173, %157 : vector<1x128xi1>, vector<1x128xf32>
    %c2_57 = arith.constant 2 : index
    %c0_58 = arith.constant 0 : index
    %c0_59 = arith.constant 0 : index
    %175 = vector.load %arg12[%c2_57, %c0_58, %c0_59] : memref<6x128x128xf32, #tpu.memory_space<vmem>>, vector<1x128x128xf32>
    %176 = vector.shape_cast %175 : vector<1x128x128xf32> to vector<128x128xf32>
    %177 = arith.mulf %118, %176 : vector<128x128xf32>
    %cst_60 = arith.constant dense<0.000000e+00> : vector<1x128xf32>
    %178 = tpu.matmul %153, %177, %cst_60 {dimension_numbers = #tpu.dot_dimension_numbers<[1], [0], [0], [1], [0, 0, 1, 1], [], []>} : vector<1x128xf32>, vector<128x128xf32>, vector<1x128xf32> -> vector<1x128xf32>
    %179 = arith.mulf %60, %153 : vector<1x128xf32>
    %180 = arith.addf %178, %179 : vector<1x128xf32>
    %181 = vector.broadcast %38 : f32 to vector<1x128xf32>
    %182 = arith.mulf %181, %174 : vector<1x128xf32>
    %183 = arith.addf %180, %182 : vector<1x128xf32>
    %cst_61 = arith.constant 0.000000e+00 : f32
    %cst_62 = arith.constant 1.000000e+00 : f32
    %184 = vector.broadcast %cst_61 : f32 to vector<1x128xf32>
    %185 = arith.maximumf %184, %174 : vector<1x128xf32>
    %186 = vector.broadcast %cst_62 : f32 to vector<1x128xf32>
    %187 = arith.minimumf %186, %185 : vector<1x128xf32>
    %c3 = arith.constant 3 : index
    %c0_63 = arith.constant 0 : index
    %188 = vector.load %arg10[%c3, %c0_63] : memref<6x128xf32, #tpu.memory_space<vmem>>, vector<1x128xf32>
    %189 = arith.mulf %188, %34 : vector<1x128xf32>
    %cst_64 = arith.constant 1.000000e+00 : f32
    %190 = arith.subf %cst_64, %40 : f32
    %191 = vector.broadcast %190 : f32 to vector<1x128xf32>
    %192 = arith.mulf %191, %187 : vector<1x128xf32>
    %193 = vector.broadcast %39 : f32 to vector<1x128xf32>
    %194 = arith.mulf %193, %183 : vector<1x128xf32>
    %cst_65 = arith.constant 1.000000e+00 : f32
    %195 = vector.broadcast %cst_65 : f32 to vector<1x128xf32>
    %196 = arith.subf %195, %187 : vector<1x128xf32>
    %197 = arith.mulf %194, %196 : vector<1x128xf32>
    %198 = arith.addf %192, %197 : vector<1x128xf32>
    %199 = arith.addf %198, %189 : vector<1x128xf32>
    %cst_66 = arith.constant 0.000000e+00 : f32
    %cst_67 = arith.constant 1.000000e+00 : f32
    %200 = vector.broadcast %cst_66 : f32 to vector<1x128xf32>
    %201 = arith.maximumf %200, %199 : vector<1x128xf32>
    %202 = vector.broadcast %cst_67 : f32 to vector<1x128xf32>
    %203 = arith.minimumf %202, %201 : vector<1x128xf32>
    %204 = arith.select %27, %203, %187 : vector<1x128xi1>, vector<1x128xf32>
    %c3_68 = arith.constant 3 : index
    %c0_69 = arith.constant 0 : index
    %c0_70 = arith.constant 0 : index
    %205 = vector.load %arg12[%c3_68, %c0_69, %c0_70] : memref<6x128x128xf32, #tpu.memory_space<vmem>>, vector<1x128x128xf32>
    %206 = vector.shape_cast %205 : vector<1x128x128xf32> to vector<128x128xf32>
    %207 = arith.mulf %118, %206 : vector<128x128xf32>
    %cst_71 = arith.constant dense<0.000000e+00> : vector<1x128xf32>
    %208 = tpu.matmul %183, %207, %cst_71 {dimension_numbers = #tpu.dot_dimension_numbers<[1], [0], [0], [1], [0, 0, 1, 1], [], []>} : vector<1x128xf32>, vector<128x128xf32>, vector<1x128xf32> -> vector<1x128xf32>
    %209 = arith.mulf %60, %183 : vector<1x128xf32>
    %210 = arith.addf %208, %209 : vector<1x128xf32>
    %211 = vector.broadcast %38 : f32 to vector<1x128xf32>
    %212 = arith.mulf %211, %204 : vector<1x128xf32>
    %213 = arith.addf %210, %212 : vector<1x128xf32>
    %cst_72 = arith.constant 0.000000e+00 : f32
    %cst_73 = arith.constant 1.000000e+00 : f32
    %214 = vector.broadcast %cst_72 : f32 to vector<1x128xf32>
    %215 = arith.maximumf %214, %204 : vector<1x128xf32>
    %216 = vector.broadcast %cst_73 : f32 to vector<1x128xf32>
    %217 = arith.minimumf %216, %215 : vector<1x128xf32>
    %c4_74 = arith.constant 4 : index
    %c0_75 = arith.constant 0 : index
    %218 = vector.load %arg10[%c4_74, %c0_75] : memref<6x128xf32, #tpu.memory_space<vmem>>, vector<1x128xf32>
    %219 = arith.mulf %218, %34 : vector<1x128xf32>
    %cst_76 = arith.constant 1.000000e+00 : f32
    %220 = arith.subf %cst_76, %40 : f32
    %221 = vector.broadcast %220 : f32 to vector<1x128xf32>
    %222 = arith.mulf %221, %217 : vector<1x128xf32>
    %223 = vector.broadcast %39 : f32 to vector<1x128xf32>
    %224 = arith.mulf %223, %213 : vector<1x128xf32>
    %cst_77 = arith.constant 1.000000e+00 : f32
    %225 = vector.broadcast %cst_77 : f32 to vector<1x128xf32>
    %226 = arith.subf %225, %217 : vector<1x128xf32>
    %227 = arith.mulf %224, %226 : vector<1x128xf32>
    %228 = arith.addf %222, %227 : vector<1x128xf32>
    %229 = arith.addf %228, %219 : vector<1x128xf32>
    %cst_78 = arith.constant 0.000000e+00 : f32
    %cst_79 = arith.constant 1.000000e+00 : f32
    %230 = vector.broadcast %cst_78 : f32 to vector<1x128xf32>
    %231 = arith.maximumf %230, %229 : vector<1x128xf32>
    %232 = vector.broadcast %cst_79 : f32 to vector<1x128xf32>
    %233 = arith.minimumf %232, %231 : vector<1x128xf32>
    %234 = arith.select %27, %233, %217 : vector<1x128xi1>, vector<1x128xf32>
    %c4_80 = arith.constant 4 : index
    %c0_81 = arith.constant 0 : index
    %c0_82 = arith.constant 0 : index
    %235 = vector.load %arg12[%c4_80, %c0_81, %c0_82] : memref<6x128x128xf32, #tpu.memory_space<vmem>>, vector<1x128x128xf32>
    %236 = vector.shape_cast %235 : vector<1x128x128xf32> to vector<128x128xf32>
    %237 = arith.mulf %118, %236 : vector<128x128xf32>
    %cst_83 = arith.constant dense<0.000000e+00> : vector<1x128xf32>
    %238 = tpu.matmul %213, %237, %cst_83 {dimension_numbers = #tpu.dot_dimension_numbers<[1], [0], [0], [1], [0, 0, 1, 1], [], []>} : vector<1x128xf32>, vector<128x128xf32>, vector<1x128xf32> -> vector<1x128xf32>
    %239 = arith.mulf %60, %213 : vector<1x128xf32>
    %240 = arith.addf %238, %239 : vector<1x128xf32>
    %241 = vector.broadcast %38 : f32 to vector<1x128xf32>
    %242 = arith.mulf %241, %234 : vector<1x128xf32>
    %243 = arith.addf %240, %242 : vector<1x128xf32>
    %cst_84 = arith.constant 0.000000e+00 : f32
    %cst_85 = arith.constant 1.000000e+00 : f32
    %244 = vector.broadcast %cst_84 : f32 to vector<1x128xf32>
    %245 = arith.maximumf %244, %234 : vector<1x128xf32>
    %246 = vector.broadcast %cst_85 : f32 to vector<1x128xf32>
    %247 = arith.minimumf %246, %245 : vector<1x128xf32>
    %c5_86 = arith.constant 5 : index
    %c0_87 = arith.constant 0 : index
    %248 = vector.load %arg10[%c5_86, %c0_87] : memref<6x128xf32, #tpu.memory_space<vmem>>, vector<1x128xf32>
    %249 = arith.mulf %248, %34 : vector<1x128xf32>
    %cst_88 = arith.constant 1.000000e+00 : f32
    %250 = arith.subf %cst_88, %40 : f32
    %251 = vector.broadcast %250 : f32 to vector<1x128xf32>
    %252 = arith.mulf %251, %247 : vector<1x128xf32>
    %253 = vector.broadcast %39 : f32 to vector<1x128xf32>
    %254 = arith.mulf %253, %243 : vector<1x128xf32>
    %cst_89 = arith.constant 1.000000e+00 : f32
    %255 = vector.broadcast %cst_89 : f32 to vector<1x128xf32>
    %256 = arith.subf %255, %247 : vector<1x128xf32>
    %257 = arith.mulf %254, %256 : vector<1x128xf32>
    %258 = arith.addf %252, %257 : vector<1x128xf32>
    %259 = arith.addf %258, %249 : vector<1x128xf32>
    %cst_90 = arith.constant 0.000000e+00 : f32
    %cst_91 = arith.constant 1.000000e+00 : f32
    %260 = vector.broadcast %cst_90 : f32 to vector<1x128xf32>
    %261 = arith.maximumf %260, %259 : vector<1x128xf32>
    %262 = vector.broadcast %cst_91 : f32 to vector<1x128xf32>
    %263 = arith.minimumf %262, %261 : vector<1x128xf32>
    %264 = arith.select %27, %263, %247 : vector<1x128xi1>, vector<1x128xf32>
    %cst_92 = arith.constant 0.000000e+00 : f32
    %cst_93 = arith.constant 1.000000e+00 : f32
    %265 = vector.broadcast %cst_92 : f32 to vector<1x128xf32>
    %266 = arith.maximumf %265, %264 : vector<1x128xf32>
    %267 = vector.broadcast %cst_93 : f32 to vector<1x128xf32>
    %268 = arith.minimumf %267, %266 : vector<1x128xf32>
    %269 = tpu.concatenate %120, %157, %187, %217, %247, %268 in 0 : vector<1x128xf32>, vector<1x128xf32>, vector<1x128xf32>, vector<1x128xf32>, vector<1x128xf32>, vector<1x128xf32> -> vector<6x128xf32>
    %c0_94 = arith.constant 0 : index
    %c0_95 = arith.constant 0 : index
    %270 = vector.load %arg13[%c0_94, %c0_95] : memref<6x128xf32, #tpu.memory_space<vmem>>, vector<6x128xf32>
    tpu.vector_store %arg13[%c0_94, %c0_95], %269 {strides = array<i32>} : memref<6x128xf32, #tpu.memory_space<vmem>>, vector<6x128xf32>,
    return
  }
}

</mosaic_0001>

<llo_original>
// kernel: tpu_custom_call.1
$region0: #{tpu_custom_call.1}
  #allocation0 [shape = 'u32[]', space=smem, size = 0x4, offset = 0x4, fixed_abs, tag = 'smem constant byte address 0x4 - core index']
  #allocation1 [shape = 'u32[144,128]{1,0:T(1,128)}', space=vmem, size = 0x12000, scoped, tag = 'internal scratch']
  #allocation2 [shape = 'f32[1,1]{1,0:T(1,128)S(1)}', space=vmem, size = 0x200, scoped, tag = 'scoped memory for tpu_custom_call.1']
  %s0 = inlined_call_operand.vmem [shape: f32[18], index: 0, kind: input, shape index: {}]
  %s1 = inlined_call_operand.vmem [shape: f32[32,128], index: 1, kind: input, shape index: {}]
  %s2 = inlined_call_operand.vmem [shape: f32[128,32], index: 2, kind: input, shape index: {}]
  %s3 = inlined_call_operand.vmem [shape: f32[128,1], index: 3, kind: input, shape index: {}]
  %s4 = inlined_call_operand.vmem [shape: f32[128,128], index: 4, kind: input, shape index: {}]
  %s5 = inlined_call_operand.vmem [shape: f32[128,1], index: 5, kind: input, shape index: {}]
  %s6 = inlined_call_operand.vmem [shape: f32[64,128], index: 6, kind: input, shape index: {}]
  %s7 = inlined_call_operand.vmem [shape: f32[64,1], index: 7, kind: input, shape index: {}]
  %s8 = inlined_call_operand.vmem [shape: f32[1,64], index: 8, kind: input, shape index: {}]
  %s9 = inlined_call_operand.<no memory space> [shape: f32[1,1], index: 9, kind: input, shape index: {}]
  %s10 = inlined_call_operand.vmem [shape: f32[6,128], index: 10, kind: input, shape index: {}]
  %s11 = inlined_call_operand.vmem [shape: f32[1,128], index: 11, kind: input, shape index: {}]
  %s12 = inlined_call_operand.hbm [shape: f32[6,128,128], index: 12, kind: input, shape index: {}]
  %s13 = inlined_call_operand.hbm [shape: f32[6,128], index: 13, kind: output, shape index: {0}]
  %s14 = inlined_call_operand.hbm [shape: f32[1,128], index: 14, kind: output, shape index: {1}]
  %15 = xla_tuple %s13, %s14
  %s16 = sld [smem:[#allocation0]]
  $region78: #{tpu_custom_call.1} parent=0
    _
  %s18 = ssub.s32 1, %s16
  %s19 = scalar_select 0, %s18, %s16
  %v20 = vstv %s9
  %21 = vst [vmem:[#allocation2] sm:$0x1] %v20
  $region1: #{tpu_custom_call.1} parent=0
    #allocation3 [shape = 'u8[512]{0}', space=smem, size = 0x200, scoped, tag = 'input window, operand 0, single buffered']
    #allocation4 [shape = 's32[1]{0}', space=sflag, size = 0x4, scoped, tag = 'scoped memory for tpu_custom_call.1']
    #allocation5 [shape = 's32[1]{0}', space=sflag, size = 0x4, scoped, tag = 'scoped memory for tpu_custom_call.1']
    #allocation6 [shape = 's32[1]{0}', space=sflag, size = 0x4, scoped, tag = 'scoped memory for tpu_custom_call.1']
    #allocation7 [shape = 'u8[393216]{0}', space=vmem, size = 0x60000, scoped, tag = 'input window, operand 12, single buffered']
    #allocation8 [shape = 'u8[4096]{0}', space=vmem, size = 0x1000, scoped, tag = 'output window, operand 0, single buffered']
    #allocation9 [shape = 'u8[512]{0}', space=vmem, size = 0x400, scoped, tag = 'output window, operand 1, single buffered']
    #allocation10 [shape = 's32[1]{0}', space=sflag, size = 0x4, scoped, tag = 'scoped memory for tpu_custom_call.1']
    %22 = vsyncpa [#allocation6], 0
    %23 = vsyncpa [#allocation4], 0
    %24 = vsyncpa [#allocation5], 0
    %25 = vsyncpa [#allocation10], 0
    // Predicated region
    $region2: #{tpu_custom_call.1} parent=1 // pred_check
      _
    $region3: #{tpu_custom_call.1} parent=1 // pred_check_branch
      %27 = sbr.rel (0) target = $region5
    $region4: #{tpu_custom_call.1} parent=1 // pred_region
      %s29 = ssub.s32 16, 16
      %30 = vsyncadd [#allocation6], %s29
      %s32 = sshll.u32 %s0, 4
      %s33 = int_to_ptr.vmem [resolvable:$true] %s32
      %35 = dma.vmem_to_smem %s33, 16, [#allocation3], [#allocation6]
    $region5: #{tpu_custom_call.1} parent=1 // pred_fallthru
      _
    // Predicated region
    $region6: #{tpu_custom_call.1} parent=1 // pred_check
      _
    $region7: #{tpu_custom_call.1} parent=1 // pred_check_branch
      %37 = sbr.rel (0) target = $region9
    $region8: #{tpu_custom_call.1} parent=1 // pred_region
      _
    $region9: #{tpu_custom_call.1} parent=1 // pred_fallthru
      _
    // Predicated region
    $region10: #{tpu_custom_call.1} parent=1 // pred_check
      _
    $region11: #{tpu_custom_call.1} parent=1 // pred_check_branch
      %39 = sbr.rel (0) target = $region13
    $region12: #{tpu_custom_call.1} parent=1 // pred_region
      _
    $region13: #{tpu_custom_call.1} parent=1 // pred_fallthru
      _
    // Predicated region
    $region14: #{tpu_custom_call.1} parent=1 // pred_check
      _
    $region15: #{tpu_custom_call.1} parent=1 // pred_check_branch
      %41 = sbr.rel (0) target = $region17
    $region16: #{tpu_custom_call.1} parent=1 // pred_region
      _
    $region17: #{tpu_custom_call.1} parent=1 // pred_fallthru
      _
    // Predicated region
    $region18: #{tpu_custom_call.1} parent=1 // pred_check
      _
    $region19: #{tpu_custom_call.1} parent=1 // pred_check_branch
      %43 = sbr.rel (0) target = $region21
    $region20: #{tpu_custom_call.1} parent=1 // pred_region
      _
    $region21: #{tpu_custom_call.1} parent=1 // pred_fallthru
      _
    // Predicated region
    $region22: #{tpu_custom_call.1} parent=1 // pred_check
      _
    $region23: #{tpu_custom_call.1} parent=1 // pred_check_branch
      %45 = sbr.rel (0) target = $region25
    $region24: #{tpu_custom_call.1} parent=1 // pred_region
      _
    $region25: #{tpu_custom_call.1} parent=1 // pred_fallthru
      _
    // Predicated region
    $region26: #{tpu_custom_call.1} parent=1 // pred_check
      _
    $region27: #{tpu_custom_call.1} parent=1 // pred_check_branch
      %47 = sbr.rel (0) target = $region29
    $region28: #{tpu_custom_call.1} parent=1 // pred_region
      _
    $region29: #{tpu_custom_call.1} parent=1 // pred_fallthru
      _
    // Predicated region
    $region30: #{tpu_custom_call.1} parent=1 // pred_check
      _
    $region31: #{tpu_custom_call.1} parent=1 // pred_check_branch
      %49 = sbr.rel (0) target = $region33
    $region32: #{tpu_custom_call.1} parent=1 // pred_region
      _
    $region33: #{tpu_custom_call.1} parent=1 // pred_fallthru
      _
    // Predicated region
    $region34: #{tpu_custom_call.1} parent=1 // pred_check
      _
    $region35: #{tpu_custom_call.1} parent=1 // pred_check_branch
      %51 = sbr.rel (0) target = $region37
    $region36: #{tpu_custom_call.1} parent=1 // pred_region
      _
    $region37: #{tpu_custom_call.1} parent=1 // pred_fallthru
      _
    // Predicated region
    $region38: #{tpu_custom_call.1} parent=1 // pred_check
      _
    $region39: #{tpu_custom_call.1} parent=1 // pred_check_branch
      %53 = sbr.rel (0) target = $region41
    $region40: #{tpu_custom_call.1} parent=1 // pred_region
      _
    $region41: #{tpu_custom_call.1} parent=1 // pred_fallthru
      _
    // Predicated region
    $region42: #{tpu_custom_call.1} parent=1 // pred_check
      _
    $region43: #{tpu_custom_call.1} parent=1 // pred_check_branch
      %55 = sbr.rel (0) target = $region45
    $region44: #{tpu_custom_call.1} parent=1 // pred_region
      _
    $region45: #{tpu_custom_call.1} parent=1 // pred_fallthru
      _
    // Predicated region
    $region46: #{tpu_custom_call.1} parent=1 // pred_check
      _
    $region47: #{tpu_custom_call.1} parent=1 // pred_check_branch
      %57 = sbr.rel (0) target = $region49
    $region48: #{tpu_custom_call.1} parent=1 // pred_region
      _
    $region49: #{tpu_custom_call.1} parent=1 // pred_fallthru
      _
    // Predicated region
    $region50: #{tpu_custom_call.1} parent=1 // pred_check
      _
    $region51: #{tpu_custom_call.1} parent=1 // pred_check_branch
      %59 = sbr.rel (0) target = $region53
    $region52: #{tpu_custom_call.1} parent=1 // pred_region
      %s61 = ssub.s32 12288, 12288
      %62 = vsyncadd [#allocation4], %s61
      %s63 = sshll.u32 [#allocation7], 4
      %s64 = int_to_ptr.vmem [resolvable:$true] %s63
      %69 = dma.hbm_to_vmem [thread:$0]  %s12, 12288, %s64, [#allocation4], 128, 128, 8
    $region53: #{tpu_custom_call.1} parent=1 // pred_fallthru
      _
    // Predicated region
    $region54: #{tpu_custom_call.1} parent=1 // pred_check
      _
    $region55: #{tpu_custom_call.1} parent=1 // pred_check_branch
      %71 = sbr.rel (0) target = $region57
    $region56: #{tpu_custom_call.1} parent=1 // pred_region
      %72 = dma.done [#allocation6], 16
    $region57: #{tpu_custom_call.1} parent=1 // pred_fallthru
      _
    // Predicated region
    $region58: #{tpu_custom_call.1} parent=1 // pred_check
      _
    $region59: #{tpu_custom_call.1} parent=1 // pred_check_branch
      %74 = sbr.rel (0) target = $region61
    $region60: #{tpu_custom_call.1} parent=1 // pred_region
      %75 = dma.done [#allocation4], 12288
    $region61: #{tpu_custom_call.1} parent=1 // pred_fallthru
      _
    %76 = sfence
    %v77 = vld [vmem:[%s2] sm:$0xff]
    %v78 = vld [vmem:[%s2 + $0x8] sm:$0xff]
    %v79 = vld [vmem:[%s2 + $0x10] sm:$0xff]
    %v80 = vld [vmem:[%s2 + $0x18] sm:$0xff]
    %v81 = vld [vmem:[%s2 + $0x20] sm:$0xff]
    %v82 = vld [vmem:[%s2 + $0x28] sm:$0xff]
    %v83 = vld [vmem:[%s2 + $0x30] sm:$0xff]
    %v84 = vld [vmem:[%s2 + $0x38] sm:$0xff]
    %v85 = vld [vmem:[%s2 + $0x40] sm:$0xff]
    %v86 = vld [vmem:[%s2 + $0x48] sm:$0xff]
    %v87 = vld [vmem:[%s2 + $0x50] sm:$0xff]
    %v88 = vld [vmem:[%s2 + $0x58] sm:$0xff]
    %v89 = vld [vmem:[%s2 + $0x60] sm:$0xff]
    %v90 = vld [vmem:[%s2 + $0x68] sm:$0xff]
    %v91 = vld [vmem:[%s2 + $0x70] sm:$0xff]
    %v92 = vld [vmem:[%s2 + $0x78] sm:$0xff]
    %v93 = vld [vmem:[%s1] sm:$0xff]
    %v94 = vld [vmem:[%s1 + $0x8] sm:$0xff]
    %v95 = vld [vmem:[%s1 + $0x10] sm:$0xff]
    %v96 = vld [vmem:[%s1 + $0x18] sm:$0xff]
    %v97 = vld [vmem:[%s3] sm:$0xff]
    %v98 = vld [vmem:[%s3 + $0x8] sm:$0xff]
    %v99 = vld [vmem:[%s3 + $0x10] sm:$0xff]
    %v100 = vld [vmem:[%s3 + $0x18] sm:$0xff]
    %v101 = vld [vmem:[%s3 + $0x20] sm:$0xff]
    %v102 = vld [vmem:[%s3 + $0x28] sm:$0xff]
    %v103 = vld [vmem:[%s3 + $0x30] sm:$0xff]
    %v104 = vld [vmem:[%s3 + $0x38] sm:$0xff]
    %v105 = vld [vmem:[%s3 + $0x40] sm:$0xff]
    %v106 = vld [vmem:[%s3 + $0x48] sm:$0xff]
    %v107 = vld [vmem:[%s3 + $0x50] sm:$0xff]
    %v108 = vld [vmem:[%s3 + $0x58] sm:$0xff]
    %v109 = vld [vmem:[%s3 + $0x60] sm:$0xff]
    %v110 = vld [vmem:[%s3 + $0x68] sm:$0xff]
    %v111 = vld [vmem:[%s3 + $0x70] sm:$0xff]
    %v112 = vld [vmem:[%s3 + $0x78] sm:$0xff]
    %114 = vset.pattern.permute.xlu0 0
    %115 = vperm.xlu0 %114, %v97
    %v116 = vpop.permute.xlu0 %115
    %119 = vset.pattern.permute.xlu0 0
    %120 = vperm.xlu0 %119, %v98
    %v121 = vpop.permute.xlu0 %120
    %124 = vset.pattern.permute.xlu0 0
    %125 = vperm.xlu0 %124, %v99
    %v126 = vpop.permute.xlu0 %125
    %129 = vset.pattern.permute.xlu0 0
    %130 = vperm.xlu0 %129, %v100
    %v131 = vpop.permute.xlu0 %130
    %134 = vset.pattern.permute.xlu0 0
    %135 = vperm.xlu0 %134, %v101
    %v136 = vpop.permute.xlu0 %135
    %139 = vset.pattern.permute.xlu0 0
    %140 = vperm.xlu0 %139, %v102
    %v141 = vpop.permute.xlu0 %140
    %144 = vset.pattern.permute.xlu0 0
    %145 = vperm.xlu0 %144, %v103
    %v146 = vpop.permute.xlu0 %145
    %149 = vset.pattern.permute.xlu0 0
    %150 = vperm.xlu0 %149, %v104
    %v151 = vpop.permute.xlu0 %150
    %154 = vset.pattern.permute.xlu0 0
    %155 = vperm.xlu0 %154, %v105
    %v156 = vpop.permute.xlu0 %155
    %159 = vset.pattern.permute.xlu0 0
    %160 = vperm.xlu0 %159, %v106
    %v161 = vpop.permute.xlu0 %160
    %164 = vset.pattern.permute.xlu0 0
    %165 = vperm.xlu0 %164, %v107
    %v166 = vpop.permute.xlu0 %165
    %169 = vset.pattern.permute.xlu0 0
    %170 = vperm.xlu0 %169, %v108
    %v171 = vpop.permute.xlu0 %170
    %174 = vset.pattern.permute.xlu0 0
    %175 = vperm.xlu0 %174, %v109
    %v176 = vpop.permute.xlu0 %175
    %179 = vset.pattern.permute.xlu0 0
    %180 = vperm.xlu0 %179, %v110
    %v181 = vpop.permute.xlu0 %180
    %184 = vset.pattern.permute.xlu0 0
    %185 = vperm.xlu0 %184, %v111
    %v186 = vpop.permute.xlu0 %185
    %189 = vset.pattern.permute.xlu0 0
    %190 = vperm.xlu0 %189, %v112
    %v191 = vpop.permute.xlu0 %190
    %vm193 = vcmask 261120
    %v195 = vsel %vm193, %v77, 0
    %v198 = vsel %vm193, %v78, 0
    %v201 = vsel %vm193, %v79, 0
    %v204 = vsel %vm193, %v80, 0
    %v207 = vsel %vm193, %v81, 0
    %v210 = vsel %vm193, %v82, 0
    %v213 = vsel %vm193, %v83, 0
    %v216 = vsel %vm193, %v84, 0
    %v219 = vsel %vm193, %v85, 0
    %v222 = vsel %vm193, %v86, 0
    %v225 = vsel %vm193, %v87, 0
    %v228 = vsel %vm193, %v88, 0
    %v231 = vsel %vm193, %v89, 0
    %v234 = vsel %vm193, %v90, 0
    %v237 = vsel %vm193, %v91, 0
    %v240 = vsel %vm193, %v92, 0
    %242 = vmatprep.subr.mxu0 0.0
    %243 = vmatpush1.msra.mxu0 %v93
    %244 = vmatprep.subr.mxu0 0.0
    %245 = vmatpush1.msra.mxu0 %v94
    %246 = vmatprep.subr.mxu0 0.0
    %247 = vmatpush1.msra.mxu0 %v95
    %248 = vmatprep.subr.mxu0 0.0
    %249 = vmatpush1.msra.mxu0 %v96
    %250 = vmatprep.subr.mxu0 0.0
    %251 = vmatpush1.msra.mxu0 0.0
    %252 = vmatprep.subr.mxu0 0.0
    %253 = vmatpush1.msra.mxu0 0.0
    %254 = vmatprep.subr.mxu0 0.0
    %255 = vmatpush1.msra.mxu0 0.0
    %256 = vmatprep.subr.mxu0 0.0
    %257 = vmatpush1.msra.mxu0 0.0
    %258 = vmatprep.subr.mxu0 0.0
    %259 = vmatpush1.msra.mxu0 0.0
    %260 = vmatprep.subr.mxu0 0.0
    %261 = vmatpush1.msra.mxu0 0.0
    %262 = vmatprep.subr.mxu0 0.0
    %263 = vmatpush1.msra.mxu0 0.0
    %264 = vmatprep.subr.mxu0 0.0
    %265 = vmatpush1.msra.mxu0 0.0
    %266 = vmatprep.subr.mxu0 0.0
    %267 = vmatpush1.msra.mxu0 0.0
    %268 = vmatprep.subr.mxu0 0.0
    %269 = vmatpush1.msra.mxu0 0.0
    %270 = vmatprep.subr.mxu0 0.0
    %271 = vmatpush1.msra.mxu0 0.0
    %272 = vmatprep.subr.mxu0 0.0
    %273 = vmatpush1.msra.mxu0 0.0
    %274 = vmatprep.subr.mxu0 0.0
    %275 = vmatpush1.msra.mxu0 0.0
    %276 = vmatprep.subr.mxu0 0.0
    %277 = vmatpush1.msra.mxu0 0.0
    %278 = vmatprep.subr.mxu0 0.0
    %279 = vmatpush1.msra.mxu0 0.0
    %280 = vmatprep.subr.mxu0 0.0
    %281 = vmatpush1.msra.mxu0 0.0
    %282 = vmatprep.subr.mxu0 0.0
    %283 = vmatpush1.msra.mxu0 0.0
    %284 = vmatprep.subr.mxu0 0.0
    %285 = vmatpush1.msra.mxu0 0.0
    %286 = vmatprep.subr.mxu0 0.0
    %287 = vmatpush1.msra.mxu0 0.0
    %288 = vmatprep.subr.mxu0 0.0
    %289 = vmatpush1.msra.mxu0 0.0
    %290 = vmatprep.subr.mxu0 0.0
    %291 = vmatpush1.msra.mxu0 0.0
    %292 = vmatprep.subr.mxu0 0.0
    %293 = vmatpush1.msra.mxu0 0.0
    %294 = vmatprep.subr.mxu0 0.0
    %295 = vmatpush1.msra.mxu0 0.0
    %296 = vmatprep.subr.mxu0 0.0
    %297 = vmatpush1.msra.mxu0 0.0
    %298 = vmatprep.subr.mxu0 0.0
    %299 = vmatpush1.msra.mxu0 0.0
    %300 = vmatprep.subr.mxu0 0.0
    %301 = vmatpush1.msra.mxu0 0.0
    %302 = vmatprep.subr.mxu0 0.0
    %303 = vmatpush1.msra.mxu0 0.0
    %304 = vmatprep.subr.mxu0 0.0
    %305 = vmatpush1.msra.mxu0 0.0
    %306 = vmatprep.mubr.f32.mxu0 0.0
    %307 = vmatmul.mubr.f32.gmra.mrb[0].mxu0 %v195
    %v308 = vpop.f32.mrb[0].mxu0
    %v309 = vadd.f32 %v116, %v308
    %v310 = vpop.f32.mrb[0].mxu0
    %311 = vmatprep.mubr.f32.mxu0 0.0
    %312 = vmatmul.mubr.f32.gmra.mrb[0].mxu0 %v198
    %v313 = vpop.f32.mrb[0].mxu0
    %v314 = vadd.f32 %v121, %v313
    %v315 = vpop.f32.mrb[0].mxu0
    %316 = vmatprep.mubr.f32.mxu0 0.0
    %317 = vmatmul.mubr.f32.gmra.mrb[0].mxu0 %v201
    %v318 = vpop.f32.mrb[0].mxu0
    %v319 = vadd.f32 %v126, %v318
    %v320 = vpop.f32.mrb[0].mxu0
    %321 = vmatprep.mubr.f32.mxu0 0.0
    %322 = vmatmul.mubr.f32.gmra.mrb[0].mxu0 %v204
    %v323 = vpop.f32.mrb[0].mxu0
    %v324 = vadd.f32 %v131, %v323
    %v325 = vpop.f32.mrb[0].mxu0
    %326 = vmatprep.mubr.f32.mxu0 0.0
    %327 = vmatmul.mubr.f32.gmra.mrb[0].mxu0 %v207
    %v328 = vpop.f32.mrb[0].mxu0
    %v329 = vadd.f32 %v136, %v328
    %v330 = vpop.f32.mrb[0].mxu0
    %331 = vmatprep.mubr.f32.mxu0 0.0
    %332 = vmatmul.mubr.f32.gmra.mrb[0].mxu0 %v210
    %v333 = vpop.f32.mrb[0].mxu0
    %v334 = vadd.f32 %v141, %v333
    %v335 = vpop.f32.mrb[0].mxu0
    %336 = vmatprep.mubr.f32.mxu0 0.0
    %337 = vmatmul.mubr.f32.gmra.mrb[0].mxu0 %v213
    %v338 = vpop.f32.mrb[0].mxu0
    %v339 = vadd.f32 %v146, %v338
    %v340 = vpop.f32.mrb[0].mxu0
    %341 = vmatprep.mubr.f32.mxu0 0.0
    %342 = vmatmul.mubr.f32.gmra.mrb[0].mxu0 %v216
    %v343 = vpop.f32.mrb[0].mxu0
    %v344 = vadd.f32 %v151, %v343
    %v345 = vpop.f32.mrb[0].mxu0
    %346 = vmatprep.mubr.f32.mxu0 0.0
    %347 = vmatmul.mubr.f32.gmra.mrb[0].mxu0 %v219
    %v348 = vpop.f32.mrb[0].mxu0
    %v349 = vadd.f32 %v156, %v348
    %v350 = vpop.f32.mrb[0].mxu0
    %351 = vmatprep.mubr.f32.mxu0 0.0
    %352 = vmatmul.mubr.f32.gmra.mrb[0].mxu0 %v222
    %v353 = vpop.f32.mrb[0].mxu0
    %v354 = vadd.f32 %v161, %v353
    %v355 = vpop.f32.mrb[0].mxu0
    %356 = vmatprep.mubr.f32.mxu0 0.0
    %357 = vmatmul.mubr.f32.gmra.mrb[0].mxu0 %v225
    %v358 = vpop.f32.mrb[0].mxu0
    %v359 = vadd.f32 %v166, %v358
    %v360 = vpop.f32.mrb[0].mxu0
    %361 = vmatprep.mubr.f32.mxu0 0.0
    %362 = vmatmul.mubr.f32.gmra.mrb[0].mxu0 %v228
    %v363 = vpop.f32.mrb[0].mxu0
    %v364 = vadd.f32 %v171, %v363
    %v365 = vpop.f32.mrb[0].mxu0
    %366 = vmatprep.mubr.f32.mxu0 0.0
    %367 = vmatmul.mubr.f32.gmra.mrb[0].mxu0 %v231
    %v368 = vpop.f32.mrb[0].mxu0
    %v369 = vadd.f32 %v176, %v368
    %v370 = vpop.f32.mrb[0].mxu0
    %371 = vmatprep.mubr.f32.mxu0 0.0
    %372 = vmatmul.mubr.f32.gmra.mrb[0].mxu0 %v234
    %v373 = vpop.f32.mrb[0].mxu0
    %v374 = vadd.f32 %v181, %v373
    %v375 = vpop.f32.mrb[0].mxu0
    %376 = vmatprep.mubr.f32.mxu0 0.0
    %377 = vmatmul.mubr.f32.gmra.mrb[0].mxu0 %v237
    %v378 = vpop.f32.mrb[0].mxu0
    %v379 = vadd.f32 %v186, %v378
    %v380 = vpop.f32.mrb[0].mxu0
    %381 = vmatprep.mubr.f32.mxu0 0.0
    %382 = vmatmul.mubr.f32.gmra.mrb[0].mxu0 %v240
    %v383 = vpop.f32.mrb[0].mxu0
    %v384 = vadd.f32 %v191, %v383
    %v385 = vpop.f32.mrb[0].mxu0
    %386 = vdwg.mxu0
    %v387 = vld [vmem:[%s4] sm:$0xff]
    %v388 = vld [vmem:[%s4 + $0x8] sm:$0xff]
    %v389 = vld [vmem:[%s4 + $0x10] sm:$0xff]
    %v390 = vld [vmem:[%s4 + $0x18] sm:$0xff]
    %v391 = vld [vmem:[%s4 + $0x20] sm:$0xff]
    %v392 = vld [vmem:[%s4 + $0x28] sm:$0xff]
    %v393 = vld [vmem:[%s4 + $0x30] sm:$0xff]
    %v394 = vld [vmem:[%s4 + $0x38] sm:$0xff]
    %v395 = vld [vmem:[%s4 + $0x40] sm:$0xff]
    %v396 = vld [vmem:[%s4 + $0x48] sm:$0xff]
    %v397 = vld [vmem:[%s4 + $0x50] sm:$0xff]
    %v398 = vld [vmem:[%s4 + $0x58] sm:$0xff]
    %v399 = vld [vmem:[%s4 + $0x60] sm:$0xff]
    %v400 = vld [vmem:[%s4 + $0x68] sm:$0xff]
    %v401 = vld [vmem:[%s4 + $0x70] sm:$0xff]
    %v402 = vld [vmem:[%s4 + $0x78] sm:$0xff]
    %v403 = vld [vmem:[%s5] sm:$0xff]
    %v404 = vld [vmem:[%s5 + $0x8] sm:$0xff]
    %v405 = vld [vmem:[%s5 + $0x10] sm:$0xff]
    %v406 = vld [vmem:[%s5 + $0x18] sm:$0xff]
    %v407 = vld [vmem:[%s5 + $0x20] sm:$0xff]
    %v408 = vld [vmem:[%s5 + $0x28] sm:$0xff]
    %v409 = vld [vmem:[%s5 + $0x30] sm:$0xff]
    %v410 = vld [vmem:[%s5 + $0x38] sm:$0xff]
    %v411 = vld [vmem:[%s5 + $0x40] sm:$0xff]
    %v412 = vld [vmem:[%s5 + $0x48] sm:$0xff]
    %v413 = vld [vmem:[%s5 + $0x50] sm:$0xff]
    %v414 = vld [vmem:[%s5 + $0x58] sm:$0xff]
    %v415 = vld [vmem:[%s5 + $0x60] sm:$0xff]
    %v416 = vld [vmem:[%s5 + $0x68] sm:$0xff]
    %v417 = vld [vmem:[%s5 + $0x70] sm:$0xff]
    %v418 = vld [vmem:[%s5 + $0x78] sm:$0xff]
    %420 = vset.pattern.permute.xlu0 0
    %421 = vperm.xlu0 %420, %v403
    %v422 = vpop.permute.xlu0 %421
    %425 = vset.pattern.permute.xlu0 0
    %426 = vperm.xlu0 %425, %v404
    %v427 = vpop.permute.xlu0 %426
    %430 = vset.pattern.permute.xlu0 0
    %431 = vperm.xlu0 %430, %v405
    %v432 = vpop.permute.xlu0 %431
    %435 = vset.pattern.permute.xlu0 0
    %436 = vperm.xlu0 %435, %v406
    %v437 = vpop.permute.xlu0 %436
    %440 = vset.pattern.permute.xlu0 0
    %441 = vperm.xlu0 %440, %v407
    %v442 = vpop.permute.xlu0 %441
    %445 = vset.pattern.permute.xlu0 0
    %446 = vperm.xlu0 %445, %v408
    %v447 = vpop.permute.xlu0 %446
    %450 = vset.pattern.permute.xlu0 0
    %451 = vperm.xlu0 %450, %v409
    %v452 = vpop.permute.xlu0 %451
    %455 = vset.pattern.permute.xlu0 0
    %456 = vperm.xlu0 %455, %v410
    %v457 = vpop.permute.xlu0 %456
    %460 = vset.pattern.permute.xlu0 0
    %461 = vperm.xlu0 %460, %v411
    %v462 = vpop.permute.xlu0 %461
    %465 = vset.pattern.permute.xlu0 0
    %466 = vperm.xlu0 %465, %v412
    %v467 = vpop.permute.xlu0 %466
    %470 = vset.pattern.permute.xlu0 0
    %471 = vperm.xlu0 %470, %v413
    %v472 = vpop.permute.xlu0 %471
    %475 = vset.pattern.permute.xlu0 0
    %476 = vperm.xlu0 %475, %v414
    %v477 = vpop.permute.xlu0 %476
    %480 = vset.pattern.permute.xlu0 0
    %481 = vperm.xlu0 %480, %v415
    %v482 = vpop.permute.xlu0 %481
    %485 = vset.pattern.permute.xlu0 0
    %486 = vperm.xlu0 %485, %v416
    %v487 = vpop.permute.xlu0 %486
    %490 = vset.pattern.permute.xlu0 0
    %491 = vperm.xlu0 %490, %v417
    %v492 = vpop.permute.xlu0 %491
    %495 = vset.pattern.permute.xlu0 0
    %496 = vperm.xlu0 %495, %v418
    %v497 = vpop.permute.xlu0 %496
    %499 = vmatprep.subr.mxu0 0.0
    %500 = vmatpush1.msra.mxu0 %v309
    %501 = vmatprep.subr.mxu0 0.0
    %502 = vmatpush1.msra.mxu0 %v314
    %503 = vmatprep.subr.mxu0 0.0
    %504 = vmatpush1.msra.mxu0 %v319
    %505 = vmatprep.subr.mxu0 0.0
    %506 = vmatpush1.msra.mxu0 %v324
    %507 = vmatprep.subr.mxu0 0.0
    %508 = vmatpush1.msra.mxu0 %v329
    %509 = vmatprep.subr.mxu0 0.0
    %510 = vmatpush1.msra.mxu0 %v334
    %511 = vmatprep.subr.mxu0 0.0
    %512 = vmatpush1.msra.mxu0 %v339
    %513 = vmatprep.subr.mxu0 0.0
    %514 = vmatpush1.msra.mxu0 %v344
    %515 = vmatprep.subr.mxu0 0.0
    %516 = vmatpush1.msra.mxu0 %v349
    %517 = vmatprep.subr.mxu0 0.0
    %518 = vmatpush1.msra.mxu0 %v354
    %519 = vmatprep.subr.mxu0 0.0
    %520 = vmatpush1.msra.mxu0 %v359
    %521 = vmatprep.subr.mxu0 0.0
    %522 = vmatpush1.msra.mxu0 %v364
    %523 = vmatprep.subr.mxu0 0.0
    %524 = vmatpush1.msra.mxu0 %v369
    %525 = vmatprep.subr.mxu0 0.0
    %526 = vmatpush1.msra.mxu0 %v374
    %527 = vmatprep.subr.mxu0 0.0
    %528 = vmatpush1.msra.mxu0 %v379
    %529 = vmatprep.subr.mxu0 0.0
    %530 = vmatpush1.msra.mxu0 %v384
    %531 = vmatprep.subr.mxu0 0.0
    %532 = vmatpush1.msra.mxu0 0.0
    %533 = vmatprep.subr.mxu0 0.0
    %534 = vmatpush1.msra.mxu0 0.0
    %535 = vmatprep.subr.mxu0 0.0
    %536 = vmatpush1.msra.mxu0 0.0
    %537 = vmatprep.subr.mxu0 0.0
    %538 = vmatpush1.msra.mxu0 0.0
    %539 = vmatprep.subr.mxu0 0.0
    %540 = vmatpush1.msra.mxu0 0.0
    %541 = vmatprep.subr.mxu0 0.0
    %542 = vmatpush1.msra.mxu0 0.0
    %543 = vmatprep.subr.mxu0 0.0
    %544 = vmatpush1.msra.mxu0 0.0
    %545 = vmatprep.subr.mxu0 0.0
    %546 = vmatpush1.msra.mxu0 0.0
    %547 = vmatprep.subr.mxu0 0.0
    %548 = vmatpush1.msra.mxu0 0.0
    %549 = vmatprep.subr.mxu0 0.0
    %550 = vmatpush1.msra.mxu0 0.0
    %551 = vmatprep.subr.mxu0 0.0
    %552 = vmatpush1.msra.mxu0 0.0
    %553 = vmatprep.subr.mxu0 0.0
    %554 = vmatpush1.msra.mxu0 0.0
    %555 = vmatprep.subr.mxu0 0.0
    %556 = vmatpush1.msra.mxu0 0.0
    %557 = vmatprep.subr.mxu0 0.0
    %558 = vmatpush1.msra.mxu0 0.0
    %559 = vmatprep.subr.mxu0 0.0
    %560 = vmatpush1.msra.mxu0 0.0
    %561 = vmatprep.subr.mxu0 0.0
    %562 = vmatpush1.msra.mxu0 0.0
    %563 = vmatprep.mubr.f32.mxu0 0.0
    %564 = vmatmul.mubr.f32.gmra.mrb[0].mxu0 %v387
    %v565 = vpop.f32.mrb[0].mxu0
    %v566 = vadd.f32 %v422, %v565
    %v567 = vpop.f32.mrb[0].mxu0
    %568 = vmatprep.mubr.f32.mxu0 0.0
    %569 = vmatmul.mubr.f32.gmra.mrb[0].mxu0 %v388
    %v570 = vpop.f32.mrb[0].mxu0
    %v571 = vadd.f32 %v427, %v570
    %v572 = vpop.f32.mrb[0].mxu0
    %573 = vmatprep.mubr.f32.mxu0 0.0
    %574 = vmatmul.mubr.f32.gmra.mrb[0].mxu0 %v389
    %v575 = vpop.f32.mrb[0].mxu0
    %v576 = vadd.f32 %v432, %v575
    %v577 = vpop.f32.mrb[0].mxu0
    %578 = vmatprep.mubr.f32.mxu0 0.0
    %579 = vmatmul.mubr.f32.gmra.mrb[0].mxu0 %v390
    %v580 = vpop.f32.mrb[0].mxu0
    %v581 = vadd.f32 %v437, %v580
    %v582 = vpop.f32.mrb[0].mxu0
    %583 = vmatprep.mubr.f32.mxu0 0.0
    %584 = vmatmul.mubr.f32.gmra.mrb[0].mxu0 %v391
    %v585 = vpop.f32.mrb[0].mxu0
    %v586 = vadd.f32 %v442, %v585
    %v587 = vpop.f32.mrb[0].mxu0
    %588 = vmatprep.mubr.f32.mxu0 0.0
    %589 = vmatmul.mubr.f32.gmra.mrb[0].mxu0 %v392
    %v590 = vpop.f32.mrb[0].mxu0
    %v591 = vadd.f32 %v447, %v590
    %v592 = vpop.f32.mrb[0].mxu0
    %593 = vmatprep.mubr.f32.mxu0 0.0
    %594 = vmatmul.mubr.f32.gmra.mrb[0].mxu0 %v393
    %v595 = vpop.f32.mrb[0].mxu0
    %v596 = vadd.f32 %v452, %v595
    %v597 = vpop.f32.mrb[0].mxu0
    %598 = vmatprep.mubr.f32.mxu0 0.0
    %599 = vmatmul.mubr.f32.gmra.mrb[0].mxu0 %v394
    %v600 = vpop.f32.mrb[0].mxu0
    %v601 = vadd.f32 %v457, %v600
    %v602 = vpop.f32.mrb[0].mxu0
    %603 = vmatprep.mubr.f32.mxu0 0.0
    %604 = vmatmul.mubr.f32.gmra.mrb[0].mxu0 %v395
    %v605 = vpop.f32.mrb[0].mxu0
    %v606 = vadd.f32 %v462, %v605
    %v607 = vpop.f32.mrb[0].mxu0
    %608 = vmatprep.mubr.f32.mxu0 0.0
    %609 = vmatmul.mubr.f32.gmra.mrb[0].mxu0 %v396
    %v610 = vpop.f32.mrb[0].mxu0
    %v611 = vadd.f32 %v467, %v610
    %v612 = vpop.f32.mrb[0].mxu0
    %613 = vmatprep.mubr.f32.mxu0 0.0
    %614 = vmatmul.mubr.f32.gmra.mrb[0].mxu0 %v397
    %v615 = vpop.f32.mrb[0].mxu0
    %v616 = vadd.f32 %v472, %v615
    %v617 = vpop.f32.mrb[0].mxu0
    %618 = vmatprep.mubr.f32.mxu0 0.0
    %619 = vmatmul.mubr.f32.gmra.mrb[0].mxu0 %v398
    %v620 = vpop.f32.mrb[0].mxu0
    %v621 = vadd.f32 %v477, %v620
    %v622 = vpop.f32.mrb[0].mxu0
    %623 = vmatprep.mubr.f32.mxu0 0.0
    %624 = vmatmul.mubr.f32.gmra.mrb[0].mxu0 %v399
    %v625 = vpop.f32.mrb[0].mxu0
    %v626 = vadd.f32 %v482, %v625
    %v627 = vpop.f32.mrb[0].mxu0
    %628 = vmatprep.mubr.f32.mxu0 0.0
    %629 = vmatmul.mubr.f32.gmra.mrb[0].mxu0 %v400
    %v630 = vpop.f32.mrb[0].mxu0
    %v631 = vadd.f32 %v487, %v630
    %v632 = vpop.f32.mrb[0].mxu0
    %633 = vmatprep.mubr.f32.mxu0 0.0
    %634 = vmatmul.mubr.f32.gmra.mrb[0].mxu0 %v401
    %v635 = vpop.f32.mrb[0].mxu0
    %v636 = vadd.f32 %v492, %v635
    %v637 = vpop.f32.mrb[0].mxu0
    %638 = vmatprep.mubr.f32.mxu0 0.0
    %639 = vmatmul.mubr.f32.gmra.mrb[0].mxu0 %v402
    %v640 = vpop.f32.mrb[0].mxu0
    %v641 = vadd.f32 %v497, %v640
    %v642 = vpop.f32.mrb[0].mxu0
    %643 = vdwg.mxu0
    %v644 = vmax.f32 %v566, 0.0
    %v645 = vmax.f32 %v571, 0.0
    %v646 = vmax.f32 %v576, 0.0
    %v647 = vmax.f32 %v581, 0.0
    %v648 = vmax.f32 %v586, 0.0
    %v649 = vmax.f32 %v591, 0.0
    %v650 = vmax.f32 %v596, 0.0
    %v651 = vmax.f32 %v601, 0.0
    %v652 = vmax.f32 %v606, 0.0
    %v653 = vmax.f32 %v611, 0.0
    %v654 = vmax.f32 %v616, 0.0
    %v655 = vmax.f32 %v621, 0.0
    %v656 = vmax.f32 %v626, 0.0
    %v657 = vmax.f32 %v631, 0.0
    %v658 = vmax.f32 %v636, 0.0
    %v659 = vmax.f32 %v641, 0.0
    %v660 = vld [vmem:[%s6] sm:$0xff]
    %v661 = vld [vmem:[%s6 + $0x8] sm:$0xff]
    %v662 = vld [vmem:[%s6 + $0x10] sm:$0xff]
    %v663 = vld [vmem:[%s6 + $0x18] sm:$0xff]
    %v664 = vld [vmem:[%s6 + $0x20] sm:$0xff]
    %v665 = vld [vmem:[%s6 + $0x28] sm:$0xff]
    %v666 = vld [vmem:[%s6 + $0x30] sm:$0xff]
    %v667 = vld [vmem:[%s6 + $0x38] sm:$0xff]
    %v668 = vld [vmem:[%s7] sm:$0xff]
    %v669 = vld [vmem:[%s7 + $0x8] sm:$0xff]
    %v670 = vld [vmem:[%s7 + $0x10] sm:$0xff]
    %v671 = vld [vmem:[%s7 + $0x18] sm:$0xff]
    %v672 = vld [vmem:[%s7 + $0x20] sm:$0xff]
    %v673 = vld [vmem:[%s7 + $0x28] sm:$0xff]
    %v674 = vld [vmem:[%s7 + $0x30] sm:$0xff]
    %v675 = vld [vmem:[%s7 + $0x38] sm:$0xff]
    %677 = vset.pattern.permute.xlu0 0
    %678 = vperm.xlu0 %677, %v668
    %v679 = vpop.permute.xlu0 %678
    %682 = vset.pattern.permute.xlu0 0
    %683 = vperm.xlu0 %682, %v669
    %v684 = vpop.permute.xlu0 %683
    %687 = vset.pattern.permute.xlu0 0
    %688 = vperm.xlu0 %687, %v670
    %v689 = vpop.permute.xlu0 %688
    %692 = vset.pattern.permute.xlu0 0
    %693 = vperm.xlu0 %692, %v671
    %v694 = vpop.permute.xlu0 %693
    %697 = vset.pattern.permute.xlu0 0
    %698 = vperm.xlu0 %697, %v672
    %v699 = vpop.permute.xlu0 %698
    %702 = vset.pattern.permute.xlu0 0
    %703 = vperm.xlu0 %702, %v673
    %v704 = vpop.permute.xlu0 %703
    %707 = vset.pattern.permute.xlu0 0
    %708 = vperm.xlu0 %707, %v674
    %v709 = vpop.permute.xlu0 %708
    %712 = vset.pattern.permute.xlu0 0
    %713 = vperm.xlu0 %712, %v675
    %v714 = vpop.permute.xlu0 %713
    %716 = vmatprep.subr.mxu0 0.0
    %717 = vmatpush1.msra.mxu0 %v644
    %718 = vmatprep.subr.mxu0 0.0
    %719 = vmatpush1.msra.mxu0 %v645
    %720 = vmatprep.subr.mxu0 0.0
    %721 = vmatpush1.msra.mxu0 %v646
    %722 = vmatprep.subr.mxu0 0.0
    %723 = vmatpush1.msra.mxu0 %v647
    %724 = vmatprep.subr.mxu0 0.0
    %725 = vmatpush1.msra.mxu0 %v648
    %726 = vmatprep.subr.mxu0 0.0
    %727 = vmatpush1.msra.mxu0 %v649
    %728 = vmatprep.subr.mxu0 0.0
    %729 = vmatpush1.msra.mxu0 %v650
    %730 = vmatprep.subr.mxu0 0.0
    %731 = vmatpush1.msra.mxu0 %v651
    %732 = vmatprep.subr.mxu0 0.0
    %733 = vmatpush1.msra.mxu0 %v652
    %734 = vmatprep.subr.mxu0 0.0
    %735 = vmatpush1.msra.mxu0 %v653
    %736 = vmatprep.subr.mxu0 0.0
    %737 = vmatpush1.msra.mxu0 %v654
    %738 = vmatprep.subr.mxu0 0.0
    %739 = vmatpush1.msra.mxu0 %v655
    %740 = vmatprep.subr.mxu0 0.0
    %741 = vmatpush1.msra.mxu0 %v656
    %742 = vmatprep.subr.mxu0 0.0
    %743 = vmatpush1.msra.mxu0 %v657
    %744 = vmatprep.subr.mxu0 0.0
    %745 = vmatpush1.msra.mxu0 %v658
    %746 = vmatprep.subr.mxu0 0.0
    %747 = vmatpush1.msra.mxu0 %v659
    %748 = vmatprep.subr.mxu0 0.0
    %749 = vmatpush1.msra.mxu0 0.0
    %750 = vmatprep.subr.mxu0 0.0
    %751 = vmatpush1.msra.mxu0 0.0
    %752 = vmatprep.subr.mxu0 0.0
    %753 = vmatpush1.msra.mxu0 0.0
    %754 = vmatprep.subr.mxu0 0.0
    %755 = vmatpush1.msra.mxu0 0.0
    %756 = vmatprep.subr.mxu0 0.0
    %757 = vmatpush1.msra.mxu0 0.0
    %758 = vmatprep.subr.mxu0 0.0
    %759 = vmatpush1.msra.mxu0 0.0
    %760 = vmatprep.subr.mxu0 0.0
    %761 = vmatpush1.msra.mxu0 0.0
    %762 = vmatprep.subr.mxu0 0.0
    %763 = vmatpush1.msra.mxu0 0.0
    %764 = vmatprep.subr.mxu0 0.0
    %765 = vmatpush1.msra.mxu0 0.0
    %766 = vmatprep.subr.mxu0 0.0
    %767 = vmatpush1.msra.mxu0 0.0
    %768 = vmatprep.subr.mxu0 0.0
    %769 = vmatpush1.msra.mxu0 0.0
    %770 = vmatprep.subr.mxu0 0.0
    %771 = vmatpush1.msra.mxu0 0.0
    %772 = vmatprep.subr.mxu0 0.0
    %773 = vmatpush1.msra.mxu0 0.0
    %774 = vmatprep.subr.mxu0 0.0
    %775 = vmatpush1.msra.mxu0 0.0
    %776 = vmatprep.subr.mxu0 0.0
    %777 = vmatpush1.msra.mxu0 0.0
    %778 = vmatprep.subr.mxu0 0.0
    %779 = vmatpush1.msra.mxu0 0.0
    %780 = vmatprep.mubr.f32.mxu0 0.0
    %781 = vmatmul.mubr.f32.gmra.mrb[0].mxu0 %v660
    %v782 = vpop.f32.mrb[0].mxu0
    %v783 = vadd.f32 %v679, %v782
    %v784 = vpop.f32.mrb[0].mxu0
    %785 = vmatprep.mubr.f32.mxu0 0.0
    %786 = vmatmul.mubr.f32.gmra.mrb[0].mxu0 %v661
    %v787 = vpop.f32.mrb[0].mxu0
    %v788 = vadd.f32 %v684, %v787
    %v789 = vpop.f32.mrb[0].mxu0
    %790 = vmatprep.mubr.f32.mxu0 0.0
    %791 = vmatmul.mubr.f32.gmra.mrb[0].mxu0 %v662
    %v792 = vpop.f32.mrb[0].mxu0
    %v793 = vadd.f32 %v689, %v792
    %v794 = vpop.f32.mrb[0].mxu0
    %795 = vmatprep.mubr.f32.mxu0 0.0
    %796 = vmatmul.mubr.f32.gmra.mrb[0].mxu0 %v663
    %v797 = vpop.f32.mrb[0].mxu0
    %v798 = vadd.f32 %v694, %v797
    %v799 = vpop.f32.mrb[0].mxu0
    %800 = vmatprep.mubr.f32.mxu0 0.0
    %801 = vmatmul.mubr.f32.gmra.mrb[0].mxu0 %v664
    %v802 = vpop.f32.mrb[0].mxu0
    %v803 = vadd.f32 %v699, %v802
    %v804 = vpop.f32.mrb[0].mxu0
    %805 = vmatprep.mubr.f32.mxu0 0.0
    %806 = vmatmul.mubr.f32.gmra.mrb[0].mxu0 %v665
    %v807 = vpop.f32.mrb[0].mxu0
    %v808 = vadd.f32 %v704, %v807
    %v809 = vpop.f32.mrb[0].mxu0
    %810 = vmatprep.mubr.f32.mxu0 0.0
    %811 = vmatmul.mubr.f32.gmra.mrb[0].mxu0 %v666
    %v812 = vpop.f32.mrb[0].mxu0
    %v813 = vadd.f32 %v709, %v812
    %v814 = vpop.f32.mrb[0].mxu0
    %815 = vmatprep.mubr.f32.mxu0 0.0
    %816 = vmatmul.mubr.f32.gmra.mrb[0].mxu0 %v667
    %v817 = vpop.f32.mrb[0].mxu0
    %v818 = vadd.f32 %v714, %v817
    %v819 = vpop.f32.mrb[0].mxu0
    %820 = vdwg.mxu0
    %v821 = vmax.f32 %v783, 0.0
    %v822 = vmax.f32 %v788, 0.0
    %v823 = vmax.f32 %v793, 0.0
    %v824 = vmax.f32 %v798, 0.0
    %v825 = vmax.f32 %v803, 0.0
    %v826 = vmax.f32 %v808, 0.0
    %v827 = vmax.f32 %v813, 0.0
    %v828 = vmax.f32 %v818, 0.0
    %v829 = vld [vmem:[%s8] sm:$0x1]
    %v830 = vld [vmem:[#allocation2] sm:$0x1]
    %832 = vset.pattern.permute.xlu0 0
    %833 = vperm.xlu0 %832, %v830
    %v834 = vpop.permute.xlu0 %833
    %v836 = vlaneseq
    %v837 = vshrl.u32 %v836, 7
    %v838 = vsub.s32 0, %v837
    %v839 = vrot.slane %v834, %v838
    %vm840 = vcmask 523264
    %v842 = vsel %vm840, %v829, 0
    %844 = vmatprep.subr.mxu0 0.0
    %845 = vmatpush1.msra.mxu0 %v821
    %846 = vmatprep.subr.mxu0 0.0
    %847 = vmatpush1.msra.mxu0 %v822
    %848 = vmatprep.subr.mxu0 0.0
    %849 = vmatpush1.msra.mxu0 %v823
    %850 = vmatprep.subr.mxu0 0.0
    %851 = vmatpush1.msra.mxu0 %v824
    %852 = vmatprep.subr.mxu0 0.0
    %853 = vmatpush1.msra.mxu0 %v825
    %854 = vmatprep.subr.mxu0 0.0
    %855 = vmatpush1.msra.mxu0 %v826
    %856 = vmatprep.subr.mxu0 0.0
    %857 = vmatpush1.msra.mxu0 %v827
    %858 = vmatprep.subr.mxu0 0.0
    %859 = vmatpush1.msra.mxu0 %v828
    %860 = vmatprep.subr.mxu0 0.0
    %861 = vmatpush1.msra.mxu0 0.0
    %862 = vmatprep.subr.mxu0 0.0
    %863 = vmatpush1.msra.mxu0 0.0
    %864 = vmatprep.subr.mxu0 0.0
    %865 = vmatpush1.msra.mxu0 0.0
    %866 = vmatprep.subr.mxu0 0.0
    %867 = vmatpush1.msra.mxu0 0.0
    %868 = vmatprep.subr.mxu0 0.0
    %869 = vmatpush1.msra.mxu0 0.0
    %870 = vmatprep.subr.mxu0 0.0
    %871 = vmatpush1.msra.mxu0 0.0
    %872 = vmatprep.subr.mxu0 0.0
    %873 = vmatpush1.msra.mxu0 0.0
    %874 = vmatprep.subr.mxu0 0.0
    %875 = vmatpush1.msra.mxu0 0.0
    %876 = vmatprep.subr.mxu0 0.0
    %877 = vmatpush1.msra.mxu0 0.0
    %878 = vmatprep.subr.mxu0 0.0
    %879 = vmatpush1.msra.mxu0 0.0
    %880 = vmatprep.subr.mxu0 0.0
    %881 = vmatpush1.msra.mxu0 0.0
    %882 = vmatprep.subr.mxu0 0.0
    %883 = vmatpush1.msra.mxu0 0.0
    %884 = vmatprep.subr.mxu0 0.0
    %885 = vmatpush1.msra.mxu0 0.0
    %886 = vmatprep.subr.mxu0 0.0
    %887 = vmatpush1.msra.mxu0 0.0
    %888 = vmatprep.subr.mxu0 0.0
    %889 = vmatpush1.msra.mxu0 0.0
    %890 = vmatprep.subr.mxu0 0.0
    %891 = vmatpush1.msra.mxu0 0.0
    %892 = vmatprep.subr.mxu0 0.0
    %893 = vmatpush1.msra.mxu0 0.0
    %894 = vmatprep.subr.mxu0 0.0
    %895 = vmatpush1.msra.mxu0 0.0
    %896 = vmatprep.subr.mxu0 0.0
    %897 = vmatpush1.msra.mxu0 0.0
    %898 = vmatprep.subr.mxu0 0.0
    %899 = vmatpush1.msra.mxu0 0.0
    %900 = vmatprep.subr.mxu0 0.0
    %901 = vmatpush1.msra.mxu0 0.0
    %902 = vmatprep.subr.mxu0 0.0
    %903 = vmatpush1.msra.mxu0 0.0
    %904 = vmatprep.subr.mxu0 0.0
    %905 = vmatpush1.msra.mxu0 0.0
    %906 = vmatprep.subr.mxu0 0.0
    %907 = vmatpush1.msra.mxu0 0.0
    %908 = vmatprep.mubr.f32.mxu0 0.0
    %909 = vmatmul.mubr.f32.gmra.mrb[0].mxu0 %v842
    %v910 = vpop.f32.mrb[0].mxu0
    %v911 = vadd.f32 %v839, %v910
    %v912 = vpop.f32.mrb[0].mxu0
    %913 = vdwg.mxu0
    %v914 = vlaneseq
    %v915 = vand.u32 %v914, 127
    %vm916 = vcmp.lt.s32.totalorder %v915, 8
    %v917 = vxor.u32 %v911, 2147483648
    %v918 = vmul.f32 %v917, 1.442695
    %v919 = vpow.pop %v918
    %v920 = vadd.f32 %v919, 1.0
    %v921 = vrcp.pop %v920
    %v922 = vmul.f32 1.0, %v921
    %v923 = vsel %vm916, %v922, 1.0
    %924 = vst [vmem:[#allocation9] sm:$0x1] %v923
    %s925 = sld [smem:[#allocation3]]
    %s926 = sld [smem:[#allocation3 + $0x1]]
    %s927 = sld [smem:[#allocation3 + $0x4]]
    %s928 = sld [smem:[#allocation3 + $0x5]]
    %s929 = sld [smem:[#allocation3 + $0x6]]
    %s930 = sld [smem:[#allocation3 + $0x7]]
    %s931 = sld [smem:[#allocation3 + $0x8]]
    %s932 = sld [smem:[#allocation3 + $0x9]]
    %s933 = sld [smem:[#allocation3 + $0xa]]
    %s934 = sld [smem:[#allocation3 + $0xb]]
    %s935 = sld [smem:[#allocation3 + $0xc]]
    %s936 = sld [smem:[#allocation3 + $0xd]]
    %s937 = sld [smem:[#allocation3 + $0xe]]
    %s938 = sld [smem:[#allocation3 + $0xf]]
    %s939 = sld [smem:[#allocation3 + $0x10]]
    %s940 = sld [smem:[#allocation3 + $0x11]]
    %vm941 = vcmp.lt.s32.totalorder %v915, 12
    %v942 = vstv %s931
    %v943 = vstv %s932
    %v944 = vsel %vm941, %v942, %v943
    %v945 = vstv %s930
    %v946 = vsel %vm916, %v945, %v944
    %v947 = vlaneseq
    %v948 = vshrl.u32 %v947, 7
    %v949 = vadd.s32 %v948, 8
    %v950 = vadd.s32 %v948, 16
    %v951 = vadd.s32 %v948, 24
    %v952 = vadd.s32 %v948, 32
    %v953 = vadd.s32 %v948, 40
    %v954 = vadd.s32 %v948, 48
    %v955 = vadd.s32 %v948, 56
    %v956 = vadd.s32 %v948, 64
    %v957 = vadd.s32 %v948, 72
    %v958 = vadd.s32 %v948, 80
    %v959 = vadd.s32 %v948, 88
    %v960 = vadd.s32 %v948, 96
    %v961 = vadd.s32 %v948, 104
    %v962 = vadd.s32 %v948, 112
    %v963 = vadd.s32 %v948, 120
    %vm964 = vcmp.lt.s32.totalorder %v948, 8
    %vm965 = vcmp.lt.s32.totalorder %v949, 8
    %vm966 = vcmp.lt.s32.totalorder %v950, 8
    %vm967 = vcmp.lt.s32.totalorder %v951, 8
    %vm968 = vcmp.lt.s32.totalorder %v952, 8
    %vm969 = vcmp.lt.s32.totalorder %v953, 8
    %vm970 = vcmp.lt.s32.totalorder %v954, 8
    %vm971 = vcmp.lt.s32.totalorder %v955, 8
    %vm972 = vcmp.lt.s32.totalorder %v956, 8
    %vm973 = vcmp.lt.s32.totalorder %v957, 8
    %vm974 = vcmp.lt.s32.totalorder %v958, 8
    %vm975 = vcmp.lt.s32.totalorder %v959, 8
    %vm976 = vcmp.lt.s32.totalorder %v960, 8
    %vm977 = vcmp.lt.s32.totalorder %v961, 8
    %vm978 = vcmp.lt.s32.totalorder %v962, 8
    %vm979 = vcmp.lt.s32.totalorder %v963, 8
    %v980 = vsel %vm964, 1, 0
    %v981 = vsel %vm965, 1, 0
    %v982 = vsel %vm966, 1, 0
    %v983 = vsel %vm967, 1, 0
    %v984 = vsel %vm968, 1, 0
    %v985 = vsel %vm969, 1, 0
    %v986 = vsel %vm970, 1, 0
    %v987 = vsel %vm971, 1, 0
    %v988 = vsel %vm972, 1, 0
    %v989 = vsel %vm973, 1, 0
    %v990 = vsel %vm974, 1, 0
    %v991 = vsel %vm975, 1, 0
    %v992 = vsel %vm976, 1, 0
    %v993 = vsel %vm977, 1, 0
    %v994 = vsel %vm978, 1, 0
    %v995 = vsel %vm979, 1, 0
    %v996 = vcvt.s32.f32 %v980
    %v997 = vcvt.s32.f32 %v981
    %v998 = vcvt.s32.f32 %v982
    %v999 = vcvt.s32.f32 %v983
    %v1000 = vcvt.s32.f32 %v984
    %v1001 = vcvt.s32.f32 %v985
    %v1002 = vcvt.s32.f32 %v986
    %v1003 = vcvt.s32.f32 %v987
    %v1004 = vcvt.s32.f32 %v988
    %v1005 = vcvt.s32.f32 %v989
    %v1006 = vcvt.s32.f32 %v990
    %v1007 = vcvt.s32.f32 %v991
    %v1008 = vcvt.s32.f32 %v992
    %v1009 = vcvt.s32.f32 %v993
    %v1010 = vcvt.s32.f32 %v994
    %v1011 = vcvt.s32.f32 %v995
    %vm1012 = vcmp.ge.s32.totalorder %v948, 8
    %vm1013 = vcmp.ge.s32.totalorder %v949, 8
    %vm1014 = vcmp.ge.s32.totalorder %v950, 8
    %vm1015 = vcmp.ge.s32.totalorder %v951, 8
    %vm1016 = vcmp.ge.s32.totalorder %v952, 8
    %vm1017 = vcmp.ge.s32.totalorder %v953, 8
    %vm1018 = vcmp.ge.s32.totalorder %v954, 8
    %vm1019 = vcmp.ge.s32.totalorder %v955, 8
    %vm1020 = vcmp.ge.s32.totalorder %v956, 8
    %vm1021 = vcmp.ge.s32.totalorder %v957, 8
    %vm1022 = vcmp.ge.s32.totalorder %v958, 8
    %vm1023 = vcmp.ge.s32.totalorder %v959, 8
    %vm1024 = vcmp.ge.s32.totalorder %v960, 8
    %vm1025 = vcmp.ge.s32.totalorder %v961, 8
    %vm1026 = vcmp.ge.s32.totalorder %v962, 8
    %vm1027 = vcmp.ge.s32.totalorder %v963, 8
    %vm1028 = vcmp.lt.s32.totalorder %v948, 12
    %vm1029 = vcmp.lt.s32.totalorder %v949, 12
    %vm1030 = vcmp.lt.s32.totalorder %v950, 12
    %vm1031 = vcmp.lt.s32.totalorder %v951, 12
    %vm1032 = vcmp.lt.s32.totalorder %v952, 12
    %vm1033 = vcmp.lt.s32.totalorder %v953, 12
    %vm1034 = vcmp.lt.s32.totalorder %v954, 12
    %vm1035 = vcmp.lt.s32.totalorder %v955, 12
    %vm1036 = vcmp.lt.s32.totalorder %v956, 12
    %vm1037 = vcmp.lt.s32.totalorder %v957, 12
    %vm1038 = vcmp.lt.s32.totalorder %v958, 12
    %vm1039 = vcmp.lt.s32.totalorder %v959, 12
    %vm1040 = vcmp.lt.s32.totalorder %v960, 12
    %vm1041 = vcmp.lt.s32.totalorder %v961, 12
    %vm1042 = vcmp.lt.s32.totalorder %v962, 12
    %vm1043 = vcmp.lt.s32.totalorder %v963, 12
    %vm1044 = vmand %vm1012, %vm1028
    %vm1045 = vmand %vm1013, %vm1029
    %vm1046 = vmand %vm1014, %vm1030
    %vm1047 = vmand %vm1015, %vm1031
    %vm1048 = vmand %vm1016, %vm1032
    %vm1049 = vmand %vm1017, %vm1033
    %vm1050 = vmand %vm1018, %vm1034
    %vm1051 = vmand %vm1019, %vm1035
    %vm1052 = vmand %vm1020, %vm1036
    %vm1053 = vmand %vm1021, %vm1037
    %vm1054 = vmand %vm1022, %vm1038
    %vm1055 = vmand %vm1023, %vm1039
    %vm1056 = vmand %vm1024, %vm1040
    %vm1057 = vmand %vm1025, %vm1041
    %vm1058 = vmand %vm1026, %vm1042
    %vm1059 = vmand %vm1027, %vm1043
    %v1060 = vsel %vm1044, 1, 0
    %v1061 = vsel %vm1045, 1, 0
    %v1062 = vsel %vm1046, 1, 0
    %v1063 = vsel %vm1047, 1, 0
    %v1064 = vsel %vm1048, 1, 0
    %v1065 = vsel %vm1049, 1, 0
    %v1066 = vsel %vm1050, 1, 0
    %v1067 = vsel %vm1051, 1, 0
    %v1068 = vsel %vm1052, 1, 0
    %v1069 = vsel %vm1053, 1, 0
    %v1070 = vsel %vm1054, 1, 0
    %v1071 = vsel %vm1055, 1, 0
    %v1072 = vsel %vm1056, 1, 0
    %v1073 = vsel %vm1057, 1, 0
    %v1074 = vsel %vm1058, 1, 0
    %v1075 = vsel %vm1059, 1, 0
    %v1076 = vcvt.s32.f32 %v1060
    %v1077 = vcvt.s32.f32 %v1061
    %v1078 = vcvt.s32.f32 %v1062
    %v1079 = vcvt.s32.f32 %v1063
    %v1080 = vcvt.s32.f32 %v1064
    %v1081 = vcvt.s32.f32 %v1065
    %v1082 = vcvt.s32.f32 %v1066
    %v1083 = vcvt.s32.f32 %v1067
    %v1084 = vcvt.s32.f32 %v1068
    %v1085 = vcvt.s32.f32 %v1069
    %v1086 = vcvt.s32.f32 %v1070
    %v1087 = vcvt.s32.f32 %v1071
    %v1088 = vcvt.s32.f32 %v1072
    %v1089 = vcvt.s32.f32 %v1073
    %v1090 = vcvt.s32.f32 %v1074
    %v1091 = vcvt.s32.f32 %v1075
    %vm1092 = vcmp.ge.s32.totalorder %v948, 12
    %vm1093 = vcmp.ge.s32.totalorder %v949, 12
    %vm1094 = vcmp.ge.s32.totalorder %v950, 12
    %vm1095 = vcmp.ge.s32.totalorder %v951, 12
    %vm1096 = vcmp.ge.s32.totalorder %v952, 12
    %vm1097 = vcmp.ge.s32.totalorder %v953, 12
    %vm1098 = vcmp.ge.s32.totalorder %v954, 12
    %vm1099 = vcmp.ge.s32.totalorder %v955, 12
    %vm1100 = vcmp.ge.s32.totalorder %v956, 12
    %vm1101 = vcmp.ge.s32.totalorder %v957, 12
    %vm1102 = vcmp.ge.s32.totalorder %v958, 12
    %vm1103 = vcmp.ge.s32.totalorder %v959, 12
    %vm1104 = vcmp.ge.s32.totalorder %v960, 12
    %vm1105 = vcmp.ge.s32.totalorder %v961, 12
    %vm1106 = vcmp.ge.s32.totalorder %v962, 12
    %vm1107 = vcmp.ge.s32.totalorder %v963, 12
    %v1108 = vsel %vm1092, 1, 0
    %v1109 = vsel %vm1093, 1, 0
    %v1110 = vsel %vm1094, 1, 0
    %v1111 = vsel %vm1095, 1, 0
    %v1112 = vsel %vm1096, 1, 0
    %v1113 = vsel %vm1097, 1, 0
    %v1114 = vsel %vm1098, 1, 0
    %v1115 = vsel %vm1099, 1, 0
    %v1116 = vsel %vm1100, 1, 0
    %v1117 = vsel %vm1101, 1, 0
    %v1118 = vsel %vm1102, 1, 0
    %v1119 = vsel %vm1103, 1, 0
    %v1120 = vsel %vm1104, 1, 0
    %v1121 = vsel %vm1105, 1, 0
    %v1122 = vsel %vm1106, 1, 0
    %v1123 = vsel %vm1107, 1, 0
    %v1124 = vcvt.s32.f32 %v1108
    %v1125 = vcvt.s32.f32 %v1109
    %v1126 = vcvt.s32.f32 %v1110
    %v1127 = vcvt.s32.f32 %v1111
    %v1128 = vcvt.s32.f32 %v1112
    %v1129 = vcvt.s32.f32 %v1113
    %v1130 = vcvt.s32.f32 %v1114
    %v1131 = vcvt.s32.f32 %v1115
    %v1132 = vcvt.s32.f32 %v1116
    %v1133 = vcvt.s32.f32 %v1117
    %v1134 = vcvt.s32.f32 %v1118
    %v1135 = vcvt.s32.f32 %v1119
    %v1136 = vcvt.s32.f32 %v1120
    %v1137 = vcvt.s32.f32 %v1121
    %v1138 = vcvt.s32.f32 %v1122
    %v1139 = vcvt.s32.f32 %v1123
    %v1140 = vsel %vm916, 1, 0
    %v1141 = vcvt.s32.f32 %v1140
    %vm1142 = vcmp.ge.s32.totalorder %v915, 8
    %vm1143 = vmand %vm1142, %vm941
    %v1144 = vsel %vm1143, 1, 0
    %v1145 = vcvt.s32.f32 %v1144
    %vm1146 = vcmp.ge.s32.totalorder %v915, 12
    %v1147 = vsel %vm1146, 1, 0
    %v1148 = vcvt.s32.f32 %v1147
    %v1149 = vstv %s933
    %v1150 = vmul.f32 %v1149, %v1141
    %v1151 = vstv %s934
    %v1152 = vmul.f32 %v1151, %v1145
    %v1153 = vadd.f32 %v1150, %v1152
    %v1154 = vstv %s935
    %v1155 = vmul.f32 %v1154, %v1148
    %v1156 = vadd.f32 %v1153, %v1155
    %v1157 = vmul.f32 %v996, %v1156
    %v1158 = vmul.f32 %v997, %v1156
    %v1159 = vmul.f32 %v998, %v1156
    %v1160 = vmul.f32 %v999, %v1156
    %v1161 = vmul.f32 %v1000, %v1156
    %v1162 = vmul.f32 %v1001, %v1156
    %v1163 = vmul.f32 %v1002, %v1156
    %v1164 = vmul.f32 %v1003, %v1156
    %v1165 = vmul.f32 %v1004, %v1156
    %v1166 = vmul.f32 %v1005, %v1156
    %v1167 = vmul.f32 %v1006, %v1156
    %v1168 = vmul.f32 %v1007, %v1156
    %v1169 = vmul.f32 %v1008, %v1156
    %v1170 = vmul.f32 %v1009, %v1156
    %v1171 = vmul.f32 %v1010, %v1156
    %v1172 = vmul.f32 %v1011, %v1156
    %v1173 = vstv %s936
    %v1174 = vmul.f32 %v1173, %v1141
    %v1175 = vstv %s937
    %v1176 = vmul.f32 %v1175, %v1145
    %v1177 = vadd.f32 %v1174, %v1176
    %v1178 = vstv %s938
    %v1179 = vmul.f32 %v1178, %v1148
    %v1180 = vadd.f32 %v1177, %v1179
    %v1181 = vmul.f32 %v1076, %v1180
    %v1182 = vmul.f32 %v1077, %v1180
    %v1183 = vmul.f32 %v1078, %v1180
    %v1184 = vmul.f32 %v1079, %v1180
    %v1185 = vmul.f32 %v1080, %v1180
    %v1186 = vmul.f32 %v1081, %v1180
    %v1187 = vmul.f32 %v1082, %v1180
    %v1188 = vmul.f32 %v1083, %v1180
    %v1189 = vmul.f32 %v1084, %v1180
    %v1190 = vmul.f32 %v1085, %v1180
    %v1191 = vmul.f32 %v1086, %v1180
    %v1192 = vmul.f32 %v1087, %v1180
    %v1193 = vmul.f32 %v1088, %v1180
    %v1194 = vmul.f32 %v1089, %v1180
    %v1195 = vmul.f32 %v1090, %v1180
    %v1196 = vmul.f32 %v1091, %v1180
    %v1197 = vadd.f32 %v1157, %v1181
    %v1198 = vadd.f32 %v1158, %v1182
    %v1199 = vadd.f32 %v1159, %v1183
    %v1200 = vadd.f32 %v1160, %v1184
    %v1201 = vadd.f32 %v1161, %v1185
    %v1202 = vadd.f32 %v1162, %v1186
    %v1203 = vadd.f32 %v1163, %v1187
    %v1204 = vadd.f32 %v1164, %v1188
    %v1205 = vadd.f32 %v1165, %v1189
    %v1206 = vadd.f32 %v1166, %v1190
    %v1207 = vadd.f32 %v1167, %v1191
    %v1208 = vadd.f32 %v1168, %v1192
    %v1209 = vadd.f32 %v1169, %v1193
    %v1210 = vadd.f32 %v1170, %v1194
    %v1211 = vadd.f32 %v1171, %v1195
    %v1212 = vadd.f32 %v1172, %v1196
    %v1213 = vstv %s939
    %v1214 = vmul.f32 %v1213, %v1141
    %v1215 = vstv %s940
    %v1216 = vmul.f32 %v1215, %v1145
    %v1217 = vadd.f32 %v1214, %v1216
    %v1218 = vmul.f32 %v1124, %v1217
    %v1219 = vmul.f32 %v1125, %v1217
    %v1220 = vmul.f32 %v1126, %v1217
    %v1221 = vmul.f32 %v1127, %v1217
    %v1222 = vmul.f32 %v1128, %v1217
    %v1223 = vmul.f32 %v1129, %v1217
    %v1224 = vmul.f32 %v1130, %v1217
    %v1225 = vmul.f32 %v1131, %v1217
    %v1226 = vmul.f32 %v1132, %v1217
    %v1227 = vmul.f32 %v1133, %v1217
    %v1228 = vmul.f32 %v1134, %v1217
    %v1229 = vmul.f32 %v1135, %v1217
    %v1230 = vmul.f32 %v1136, %v1217
    %v1231 = vmul.f32 %v1137, %v1217
    %v1232 = vmul.f32 %v1138, %v1217
    %v1233 = vmul.f32 %v1139, %v1217
    %v1234 = vadd.f32 %v1197, %v1218
    %v1235 = vadd.f32 %v1198, %v1219
    %v1236 = vadd.f32 %v1199, %v1220
    %v1237 = vadd.f32 %v1200, %v1221
    %v1238 = vadd.f32 %v1201, %v1222
    %v1239 = vadd.f32 %v1202, %v1223
    %v1240 = vadd.f32 %v1203, %v1224
    %v1241 = vadd.f32 %v1204, %v1225
    %v1242 = vadd.f32 %v1205, %v1226
    %v1243 = vadd.f32 %v1206, %v1227
    %v1244 = vadd.f32 %v1207, %v1228
    %v1245 = vadd.f32 %v1208, %v1229
    %v1246 = vadd.f32 %v1209, %v1230
    %v1247 = vadd.f32 %v1210, %v1231
    %v1248 = vadd.f32 %v1211, %v1232
    %v1249 = vadd.f32 %v1212, %v1233
    %v1250 = vld [vmem:[%s10] sm:$0x1]
    %v1251 = vmul.f32 %v1250, %v923
    %v1252 = vmul.f32 %v1251, %v1250
    %v1253 = vld [vmem:[%s11] sm:$0x1]
    %v1254 = vstv %s926
    %v1255 = vmul.f32 %v1254, %v1253
    %v1256 = vstv %s925
    %v1257 = vadd.f32 %v1256, %v1255
    %v1258 = vmul.f32 %v1252, %v1257
    %v1259 = vld [vmem:[%s10 + $0x1] sm:$0x1]
    %v1260 = vmul.f32 %v1259, %v923
    %s1261 = ssub.f32 1.0, %s929
    %v1262 = vstv %s1261
    %v1263 = vmul.f32 %v1262, %v1251
    %v1264 = vstv %s928
    %v1265 = vmul.f32 %v1264, %v1258
    %v1266 = vsub.f32 1.0, %v1251
    %v1267 = vmul.f32 %v1265, %v1266
    %v1268 = vadd.f32 %v1263, %v1267
    %v1269 = vadd.f32 %v1268, %v1260
    %v1270 = vmax.f32 %v1269, 0.0
    %v1271 = vmin.f32 %v1270, 1.0
    %v1272 = vsel %vm916, %v1271, %v1251
    %s1273 = scalar_lea.vmem [#allocation7], 128
    %v1274 = vld [vmem:[%s1273] sm:$0xff]
    %v1275 = vld [vmem:[%s1273 + $0x8] sm:$0xff]
    %v1276 = vld [vmem:[%s1273 + $0x10] sm:$0xff]
    %v1277 = vld [vmem:[%s1273 + $0x18] sm:$0xff]
    %v1278 = vld [vmem:[%s1273 + $0x20] sm:$0xff]
    %v1279 = vld [vmem:[%s1273 + $0x28] sm:$0xff]
    %v1280 = vld [vmem:[%s1273 + $0x30] sm:$0xff]
    %v1281 = vld [vmem:[%s1273 + $0x38] sm:$0xff]
    %v1282 = vld [vmem:[%s1273 + $0x40] sm:$0xff]
    %v1283 = vld [vmem:[%s1273 + $0x48] sm:$0xff]
    %v1284 = vld [vmem:[%s1273 + $0x50] sm:$0xff]
    %v1285 = vld [vmem:[%s1273 + $0x58] sm:$0xff]
    %v1286 = vld [vmem:[%s1273 + $0x60] sm:$0xff]
    %v1287 = vld [vmem:[%s1273 + $0x68] sm:$0xff]
    %v1288 = vld [vmem:[%s1273 + $0x70] sm:$0xff]
    %v1289 = vld [vmem:[%s1273 + $0x78] sm:$0xff]
    %v1290 = vmul.f32 %v1234, %v1274
    %v1291 = vmul.f32 %v1235, %v1275
    %v1292 = vmul.f32 %v1236, %v1276
    %v1293 = vmul.f32 %v1237, %v1277
    %v1294 = vmul.f32 %v1238, %v1278
    %v1295 = vmul.f32 %v1239, %v1279
    %v1296 = vmul.f32 %v1240, %v1280
    %v1297 = vmul.f32 %v1241, %v1281
    %v1298 = vmul.f32 %v1242, %v1282
    %v1299 = vmul.f32 %v1243, %v1283
    %v1300 = vmul.f32 %v1244, %v1284
    %v1301 = vmul.f32 %v1245, %v1285
    %v1302 = vmul.f32 %v1246, %v1286
    %v1303 = vmul.f32 %v1247, %v1287
    %v1304 = vmul.f32 %v1248, %v1288
    %v1305 = vmul.f32 %v1249, %v1289
    %v1306 = vmul.f32 %v946, %v1258
    %1307 = vmatprep.subr.mxu0 0.0
    %1308 = vmatpush1.msra.mxu0 %v1290
    %1309 = vmatprep.subr.mxu0 0.0
    %1310 = vmatpush1.msra.mxu0 %v1291
    %1311 = vmatprep.subr.mxu0 0.0
    %1312 = vmatpush1.msra.mxu0 %v1292
    %1313 = vmatprep.subr.mxu0 0.0
    %1314 = vmatpush1.msra.mxu0 %v1293
    %1315 = vmatprep.subr.mxu0 0.0
    %1316 = vmatpush1.msra.mxu0 %v1294
    %1317 = vmatprep.subr.mxu0 0.0
    %1318 = vmatpush1.msra.mxu0 %v1295
    %1319 = vmatprep.subr.mxu0 0.0
    %1320 = vmatpush1.msra.mxu0 %v1296
    %1321 = vmatprep.subr.mxu0 0.0
    %1322 = vmatpush1.msra.mxu0 %v1297
    %1323 = vmatprep.subr.mxu0 0.0
    %1324 = vmatpush1.msra.mxu0 %v1298
    %1325 = vmatprep.subr.mxu0 0.0
    %1326 = vmatpush1.msra.mxu0 %v1299
    %1327 = vmatprep.subr.mxu0 0.0
    %1328 = vmatpush1.msra.mxu0 %v1300
    %1329 = vmatprep.subr.mxu0 0.0
    %1330 = vmatpush1.msra.mxu0 %v1301
    %1331 = vmatprep.subr.mxu0 0.0
    %1332 = vmatpush1.msra.mxu0 %v1302
    %1333 = vmatprep.subr.mxu0 0.0
    %1334 = vmatpush1.msra.mxu0 %v1303
    %1335 = vmatprep.subr.mxu0 0.0
    %1336 = vmatpush1.msra.mxu0 %v1304
    %1337 = vmatprep.subr.mxu0 0.0
    %1338 = vmatpush1.msra.mxu0 %v1305
    %1339 = vmatprep.subr.mxu0 0.0
    %1340 = vmatpush1.msra.mxu0 0.0
    %1341 = vmatprep.subr.mxu0 0.0
    %1342 = vmatpush1.msra.mxu0 0.0
    %1343 = vmatprep.subr.mxu0 0.0
    %1344 = vmatpush1.msra.mxu0 0.0
    %1345 = vmatprep.subr.mxu0 0.0
    %1346 = vmatpush1.msra.mxu0 0.0
    %1347 = vmatprep.subr.mxu0 0.0
    %1348 = vmatpush1.msra.mxu0 0.0
    %1349 = vmatprep.subr.mxu0 0.0
    %1350 = vmatpush1.msra.mxu0 0.0
    %1351 = vmatprep.subr.mxu0 0.0
    %1352 = vmatpush1.msra.mxu0 0.0
    %1353 = vmatprep.subr.mxu0 0.0
    %1354 = vmatpush1.msra.mxu0 0.0
    %1355 = vmatprep.subr.mxu0 0.0
    %1356 = vmatpush1.msra.mxu0 0.0
    %1357 = vmatprep.subr.mxu0 0.0
    %1358 = vmatpush1.msra.mxu0 0.0
    %1359 = vmatprep.subr.mxu0 0.0
    %1360 = vmatpush1.msra.mxu0 0.0
    %1361 = vmatprep.subr.mxu0 0.0
    %1362 = vmatpush1.msra.mxu0 0.0
    %1363 = vmatprep.subr.mxu0 0.0
    %1364 = vmatpush1.msra.mxu0 0.0
    %1365 = vmatprep.subr.mxu0 0.0
    %1366 = vmatpush1.msra.mxu0 0.0
    %1367 = vmatprep.subr.mxu0 0.0
    %1368 = vmatpush1.msra.mxu0 0.0
    %1369 = vmatprep.subr.mxu0 0.0
    %1370 = vmatpush1.msra.mxu0 0.0
    %1371 = vmatprep.mubr.f32.mxu0 0.0
    %1372 = vmatmul.mubr.f32.gmra.mrb[0].mxu0 %v1258
    %v1373 = vpop.f32.mrb[0].mxu0
    %v1374 = vadd.f32 %v1306, %v1373
    %v1375 = vpop.f32.mrb[0].mxu0
    %1376 = vdwg.mxu0
    %v1377 = vstv %s927
    %v1378 = vmul.f32 %v1377, %v1272
    %v1379 = vadd.f32 %v1374, %v1378
    %v1380 = vmax.f32 %v1272, 0.0
    %v1381 = vmin.f32 %v1380, 1.0
    %v1382 = vld [vmem:[%s10 + $0x2] sm:$0x1]
    %v1383 = vmul.f32 %v1382, %v923
    %v1384 = vmul.f32 %v1262, %v1381
    %v1385 = vmul.f32 %v1264, %v1379
    %v1386 = vsub.f32 1.0, %v1381
    %v1387 = vmul.f32 %v1385, %v1386
    %v1388 = vadd.f32 %v1384, %v1387
    %v1389 = vadd.f32 %v1388, %v1383
    %v1390 = vmax.f32 %v1389, 0.0
    %v1391 = vmin.f32 %v1390, 1.0
    %v1392 = vsel %vm916, %v1391, %v1381
    %s1393 = scalar_lea.vmem [#allocation7], 256
    %v1394 = vld [vmem:[%s1393] sm:$0xff]
    %v1395 = vld [vmem:[%s1393 + $0x8] sm:$0xff]
    %v1396 = vld [vmem:[%s1393 + $0x10] sm:$0xff]
    %v1397 = vld [vmem:[%s1393 + $0x18] sm:$0xff]
    %v1398 = vld [vmem:[%s1393 + $0x20] sm:$0xff]
    %v1399 = vld [vmem:[%s1393 + $0x28] sm:$0xff]
    %v1400 = vld [vmem:[%s1393 + $0x30] sm:$0xff]
    %v1401 = vld [vmem:[%s1393 + $0x38] sm:$0xff]
    %v1402 = vld [vmem:[%s1393 + $0x40] sm:$0xff]
    %v1403 = vld [vmem:[%s1393 + $0x48] sm:$0xff]
    %v1404 = vld [vmem:[%s1393 + $0x50] sm:$0xff]
    %v1405 = vld [vmem:[%s1393 + $0x58] sm:$0xff]
    %v1406 = vld [vmem:[%s1393 + $0x60] sm:$0xff]
    %v1407 = vld [vmem:[%s1393 + $0x68] sm:$0xff]
    %v1408 = vld [vmem:[%s1393 + $0x70] sm:$0xff]
    %v1409 = vld [vmem:[%s1393 + $0x78] sm:$0xff]
    %v1410 = vmul.f32 %v1234, %v1394
    %v1411 = vmul.f32 %v1235, %v1395
    %v1412 = vmul.f32 %v1236, %v1396
    %v1413 = vmul.f32 %v1237, %v1397
    %v1414 = vmul.f32 %v1238, %v1398
    %v1415 = vmul.f32 %v1239, %v1399
    %v1416 = vmul.f32 %v1240, %v1400
    %v1417 = vmul.f32 %v1241, %v1401
    %v1418 = vmul.f32 %v1242, %v1402
    %v1419 = vmul.f32 %v1243, %v1403
    %v1420 = vmul.f32 %v1244, %v1404
    %v1421 = vmul.f32 %v1245, %v1405
    %v1422 = vmul.f32 %v1246, %v1406
    %v1423 = vmul.f32 %v1247, %v1407
    %v1424 = vmul.f32 %v1248, %v1408
    %v1425 = vmul.f32 %v1249, %v1409
    %v1426 = vmul.f32 %v946, %v1379
    %1427 = vmatprep.subr.mxu0 0.0
    %1428 = vmatpush1.msra.mxu0 %v1410
    %1429 = vmatprep.subr.mxu0 0.0
    %1430 = vmatpush1.msra.mxu0 %v1411
    %1431 = vmatprep.subr.mxu0 0.0
    %1432 = vmatpush1.msra.mxu0 %v1412
    %1433 = vmatprep.subr.mxu0 0.0
    %1434 = vmatpush1.msra.mxu0 %v1413
    %1435 = vmatprep.subr.mxu0 0.0
    %1436 = vmatpush1.msra.mxu0 %v1414
    %1437 = vmatprep.subr.mxu0 0.0
    %1438 = vmatpush1.msra.mxu0 %v1415
    %1439 = vmatprep.subr.mxu0 0.0
    %1440 = vmatpush1.msra.mxu0 %v1416
    %1441 = vmatprep.subr.mxu0 0.0
    %1442 = vmatpush1.msra.mxu0 %v1417
    %1443 = vmatprep.subr.mxu0 0.0
    %1444 = vmatpush1.msra.mxu0 %v1418
    %1445 = vmatprep.subr.mxu0 0.0
    %1446 = vmatpush1.msra.mxu0 %v1419
    %1447 = vmatprep.subr.mxu0 0.0
    %1448 = vmatpush1.msra.mxu0 %v1420
    %1449 = vmatprep.subr.mxu0 0.0
    %1450 = vmatpush1.msra.mxu0 %v1421
    %1451 = vmatprep.subr.mxu0 0.0
    %1452 = vmatpush1.msra.mxu0 %v1422
    %1453 = vmatprep.subr.mxu0 0.0
    %1454 = vmatpush1.msra.mxu0 %v1423
    %1455 = vmatprep.subr.mxu0 0.0
    %1456 = vmatpush1.msra.mxu0 %v1424
    %1457 = vmatprep.subr.mxu0 0.0
    %1458 = vmatpush1.msra.mxu0 %v1425
    %1459 = vmatprep.subr.mxu0 0.0
    %1460 = vmatpush1.msra.mxu0 0.0
    %1461 = vmatprep.subr.mxu0 0.0
    %1462 = vmatpush1.msra.mxu0 0.0
    %1463 = vmatprep.subr.mxu0 0.0
    %1464 = vmatpush1.msra.mxu0 0.0
    %1465 = vmatprep.subr.mxu0 0.0
    %1466 = vmatpush1.msra.mxu0 0.0
    %1467 = vmatprep.subr.mxu0 0.0
    %1468 = vmatpush1.msra.mxu0 0.0
    %1469 = vmatprep.subr.mxu0 0.0
    %1470 = vmatpush1.msra.mxu0 0.0
    %1471 = vmatprep.subr.mxu0 0.0
    %1472 = vmatpush1.msra.mxu0 0.0
    %1473 = vmatprep.subr.mxu0 0.0
    %1474 = vmatpush1.msra.mxu0 0.0
    %1475 = vmatprep.subr.mxu0 0.0
    %1476 = vmatpush1.msra.mxu0 0.0
    %1477 = vmatprep.subr.mxu0 0.0
    %1478 = vmatpush1.msra.mxu0 0.0
    %1479 = vmatprep.subr.mxu0 0.0
    %1480 = vmatpush1.msra.mxu0 0.0
    %1481 = vmatprep.subr.mxu0 0.0
    %1482 = vmatpush1.msra.mxu0 0.0
    %1483 = vmatprep.subr.mxu0 0.0
    %1484 = vmatpush1.msra.mxu0 0.0
    %1485 = vmatprep.subr.mxu0 0.0
    %1486 = vmatpush1.msra.mxu0 0.0
    %1487 = vmatprep.subr.mxu0 0.0
    %1488 = vmatpush1.msra.mxu0 0.0
    %1489 = vmatprep.subr.mxu0 0.0
    %1490 = vmatpush1.msra.mxu0 0.0
    %1491 = vmatprep.mubr.f32.mxu0 0.0
    %1492 = vmatmul.mubr.f32.gmra.mrb[0].mxu0 %v1379
    %v1493 = vpop.f32.mrb[0].mxu0
    %v1494 = vadd.f32 %v1426, %v1493
    %v1495 = vpop.f32.mrb[0].mxu0
    %1496 = vdwg.mxu0
    %v1497 = vmul.f32 %v1377, %v1392
    %v1498 = vadd.f32 %v1494, %v1497
    %v1499 = vmax.f32 %v1392, 0.0
    %v1500 = vmin.f32 %v1499, 1.0
    %v1501 = vld [vmem:[%s10 + $0x3] sm:$0x1]
    %v1502 = vmul.f32 %v1501, %v923
    %v1503 = vmul.f32 %v1262, %v1500
    %v1504 = vmul.f32 %v1264, %v1498
    %v1505 = vsub.f32 1.0, %v1500
    %v1506 = vmul.f32 %v1504, %v1505
    %v1507 = vadd.f32 %v1503, %v1506
    %v1508 = vadd.f32 %v1507, %v1502
    %v1509 = vmax.f32 %v1508, 0.0
    %v1510 = vmin.f32 %v1509, 1.0
    %v1511 = vsel %vm916, %v1510, %v1500
    %s1512 = scalar_lea.vmem [#allocation7], 384
    %v1513 = vld [vmem:[%s1512] sm:$0xff]
    %v1514 = vld [vmem:[%s1512 + $0x8] sm:$0xff]
    %v1515 = vld [vmem:[%s1512 + $0x10] sm:$0xff]
    %v1516 = vld [vmem:[%s1512 + $0x18] sm:$0xff]
    %v1517 = vld [vmem:[%s1512 + $0x20] sm:$0xff]
    %v1518 = vld [vmem:[%s1512 + $0x28] sm:$0xff]
    %v1519 = vld [vmem:[%s1512 + $0x30] sm:$0xff]
    %v1520 = vld [vmem:[%s1512 + $0x38] sm:$0xff]
    %v1521 = vld [vmem:[%s1512 + $0x40] sm:$0xff]
    %v1522 = vld [vmem:[%s1512 + $0x48] sm:$0xff]
    %v1523 = vld [vmem:[%s1512 + $0x50] sm:$0xff]
    %v1524 = vld [vmem:[%s1512 + $0x58] sm:$0xff]
    %v1525 = vld [vmem:[%s1512 + $0x60] sm:$0xff]
    %v1526 = vld [vmem:[%s1512 + $0x68] sm:$0xff]
    %v1527 = vld [vmem:[%s1512 + $0x70] sm:$0xff]
    %v1528 = vld [vmem:[%s1512 + $0x78] sm:$0xff]
    %v1529 = vmul.f32 %v1234, %v1513
    %v1530 = vmul.f32 %v1235, %v1514
    %v1531 = vmul.f32 %v1236, %v1515
    %v1532 = vmul.f32 %v1237, %v1516
    %v1533 = vmul.f32 %v1238, %v1517
    %v1534 = vmul.f32 %v1239, %v1518
    %v1535 = vmul.f32 %v1240, %v1519
    %v1536 = vmul.f32 %v1241, %v1520
    %v1537 = vmul.f32 %v1242, %v1521
    %v1538 = vmul.f32 %v1243, %v1522
    %v1539 = vmul.f32 %v1244, %v1523
    %v1540 = vmul.f32 %v1245, %v1524
    %v1541 = vmul.f32 %v1246, %v1525
    %v1542 = vmul.f32 %v1247, %v1526
    %v1543 = vmul.f32 %v1248, %v1527
    %v1544 = vmul.f32 %v1249, %v1528
    %v1545 = vmul.f32 %v946, %v1498
    %1546 = vmatprep.subr.mxu0 0.0
    %1547 = vmatpush1.msra.mxu0 %v1529
    %1548 = vmatprep.subr.mxu0 0.0
    %1549 = vmatpush1.msra.mxu0 %v1530
    %1550 = vmatprep.subr.mxu0 0.0
    %1551 = vmatpush1.msra.mxu0 %v1531
    %1552 = vmatprep.subr.mxu0 0.0
    %1553 = vmatpush1.msra.mxu0 %v1532
    %1554 = vmatprep.subr.mxu0 0.0
    %1555 = vmatpush1.msra.mxu0 %v1533
    %1556 = vmatprep.subr.mxu0 0.0
    %1557 = vmatpush1.msra.mxu0 %v1534
    %1558 = vmatprep.subr.mxu0 0.0
    %1559 = vmatpush1.msra.mxu0 %v1535
    %1560 = vmatprep.subr.mxu0 0.0
    %1561 = vmatpush1.msra.mxu0 %v1536
    %1562 = vmatprep.subr.mxu0 0.0
    %1563 = vmatpush1.msra.mxu0 %v1537
    %1564 = vmatprep.subr.mxu0 0.0
    %1565 = vmatpush1.msra.mxu0 %v1538
    %1566 = vmatprep.subr.mxu0 0.0
    %1567 = vmatpush1.msra.mxu0 %v1539
    %1568 = vmatprep.subr.mxu0 0.0
    %1569 = vmatpush1.msra.mxu0 %v1540
    %1570 = vmatprep.subr.mxu0 0.0
    %1571 = vmatpush1.msra.mxu0 %v1541
    %1572 = vmatprep.subr.mxu0 0.0
    %1573 = vmatpush1.msra.mxu0 %v1542
    %1574 = vmatprep.subr.mxu0 0.0
    %1575 = vmatpush1.msra.mxu0 %v1543
    %1576 = vmatprep.subr.mxu0 0.0
    %1577 = vmatpush1.msra.mxu0 %v1544
    %1578 = vmatprep.subr.mxu0 0.0
    %1579 = vmatpush1.msra.mxu0 0.0
    %1580 = vmatprep.subr.mxu0 0.0
    %1581 = vmatpush1.msra.mxu0 0.0
    %1582 = vmatprep.subr.mxu0 0.0
    %1583 = vmatpush1.msra.mxu0 0.0
    %1584 = vmatprep.subr.mxu0 0.0
    %1585 = vmatpush1.msra.mxu0 0.0
    %1586 = vmatprep.subr.mxu0 0.0
    %1587 = vmatpush1.msra.mxu0 0.0
    %1588 = vmatprep.subr.mxu0 0.0
    %1589 = vmatpush1.msra.mxu0 0.0
    %1590 = vmatprep.subr.mxu0 0.0
    %1591 = vmatpush1.msra.mxu0 0.0
    %1592 = vmatprep.subr.mxu0 0.0
    %1593 = vmatpush1.msra.mxu0 0.0
    %1594 = vmatprep.subr.mxu0 0.0
    %1595 = vmatpush1.msra.mxu0 0.0
    %1596 = vmatprep.subr.mxu0 0.0
    %1597 = vmatpush1.msra.mxu0 0.0
    %1598 = vmatprep.subr.mxu0 0.0
    %1599 = vmatpush1.msra.mxu0 0.0
    %1600 = vmatprep.subr.mxu0 0.0
    %1601 = vmatpush1.msra.mxu0 0.0
    %1602 = vmatprep.subr.mxu0 0.0
    %1603 = vmatpush1.msra.mxu0 0.0
    %1604 = vmatprep.subr.mxu0 0.0
    %1605 = vmatpush1.msra.mxu0 0.0
    %1606 = vmatprep.subr.mxu0 0.0
    %1607 = vmatpush1.msra.mxu0 0.0
    %1608 = vmatprep.subr.mxu0 0.0
    %1609 = vmatpush1.msra.mxu0 0.0
    %1610 = vmatprep.mubr.f32.mxu0 0.0
    %1611 = vmatmul.mubr.f32.gmra.mrb[0].mxu0 %v1498
    %v1612 = vpop.f32.mrb[0].mxu0
    %v1613 = vadd.f32 %v1545, %v1612
    %v1614 = vpop.f32.mrb[0].mxu0
    %1615 = vdwg.mxu0
    %v1616 = vmul.f32 %v1377, %v1511
    %v1617 = vadd.f32 %v1613, %v1616
    %v1618 = vmax.f32 %v1511, 0.0
    %v1619 = vmin.f32 %v1618, 1.0
    %v1620 = vld [vmem:[%s10 + $0x4] sm:$0x1]
    %v1621 = vmul.f32 %v1620, %v923
    %v1622 = vmul.f32 %v1262, %v1619
    %v1623 = vmul.f32 %v1264, %v1617
    %v1624 = vsub.f32 1.0, %v1619
    %v1625 = vmul.f32 %v1623, %v1624
    %v1626 = vadd.f32 %v1622, %v1625
    %v1627 = vadd.f32 %v1626, %v1621
    %v1628 = vmax.f32 %v1627, 0.0
    %v1629 = vmin.f32 %v1628, 1.0
    %v1630 = vsel %vm916, %v1629, %v1619
    %s1631 = scalar_lea.vmem [#allocation7], 512
    %v1632 = vld [vmem:[%s1631] sm:$0xff]
    %v1633 = vld [vmem:[%s1631 + $0x8] sm:$0xff]
    %v1634 = vld [vmem:[%s1631 + $0x10] sm:$0xff]
    %v1635 = vld [vmem:[%s1631 + $0x18] sm:$0xff]
    %v1636 = vld [vmem:[%s1631 + $0x20] sm:$0xff]
    %v1637 = vld [vmem:[%s1631 + $0x28] sm:$0xff]
    %v1638 = vld [vmem:[%s1631 + $0x30] sm:$0xff]
    %v1639 = vld [vmem:[%s1631 + $0x38] sm:$0xff]
    %v1640 = vld [vmem:[%s1631 + $0x40] sm:$0xff]
    %v1641 = vld [vmem:[%s1631 + $0x48] sm:$0xff]
    %v1642 = vld [vmem:[%s1631 + $0x50] sm:$0xff]
    %v1643 = vld [vmem:[%s1631 + $0x58] sm:$0xff]
    %v1644 = vld [vmem:[%s1631 + $0x60] sm:$0xff]
    %v1645 = vld [vmem:[%s1631 + $0x68] sm:$0xff]
    %v1646 = vld [vmem:[%s1631 + $0x70] sm:$0xff]
    %v1647 = vld [vmem:[%s1631 + $0x78] sm:$0xff]
    %v1648 = vmul.f32 %v1234, %v1632
    %v1649 = vmul.f32 %v1235, %v1633
    %v1650 = vmul.f32 %v1236, %v1634
    %v1651 = vmul.f32 %v1237, %v1635
    %v1652 = vmul.f32 %v1238, %v1636
    %v1653 = vmul.f32 %v1239, %v1637
    %v1654 = vmul.f32 %v1240, %v1638
    %v1655 = vmul.f32 %v1241, %v1639
    %v1656 = vmul.f32 %v1242, %v1640
    %v1657 = vmul.f32 %v1243, %v1641
    %v1658 = vmul.f32 %v1244, %v1642
    %v1659 = vmul.f32 %v1245, %v1643
    %v1660 = vmul.f32 %v1246, %v1644
    %v1661 = vmul.f32 %v1247, %v1645
    %v1662 = vmul.f32 %v1248, %v1646
    %v1663 = vmul.f32 %v1249, %v1647
    %v1664 = vmul.f32 %v946, %v1617
    %1665 = vmatprep.subr.mxu0 0.0
    %1666 = vmatpush1.msra.mxu0 %v1648
    %1667 = vmatprep.subr.mxu0 0.0
    %1668 = vmatpush1.msra.mxu0 %v1649
    %1669 = vmatprep.subr.mxu0 0.0
    %1670 = vmatpush1.msra.mxu0 %v1650
    %1671 = vmatprep.subr.mxu0 0.0
    %1672 = vmatpush1.msra.mxu0 %v1651
    %1673 = vmatprep.subr.mxu0 0.0
    %1674 = vmatpush1.msra.mxu0 %v1652
    %1675 = vmatprep.subr.mxu0 0.0
    %1676 = vmatpush1.msra.mxu0 %v1653
    %1677 = vmatprep.subr.mxu0 0.0
    %1678 = vmatpush1.msra.mxu0 %v1654
    %1679 = vmatprep.subr.mxu0 0.0
    %1680 = vmatpush1.msra.mxu0 %v1655
    %1681 = vmatprep.subr.mxu0 0.0
    %1682 = vmatpush1.msra.mxu0 %v1656
    %1683 = vmatprep.subr.mxu0 0.0
    %1684 = vmatpush1.msra.mxu0 %v1657
    %1685 = vmatprep.subr.mxu0 0.0
    %1686 = vmatpush1.msra.mxu0 %v1658
    %1687 = vmatprep.subr.mxu0 0.0
    %1688 = vmatpush1.msra.mxu0 %v1659
    %1689 = vmatprep.subr.mxu0 0.0
    %1690 = vmatpush1.msra.mxu0 %v1660
    %1691 = vmatprep.subr.mxu0 0.0
    %1692 = vmatpush1.msra.mxu0 %v1661
    %1693 = vmatprep.subr.mxu0 0.0
    %1694 = vmatpush1.msra.mxu0 %v1662
    %1695 = vmatprep.subr.mxu0 0.0
    %1696 = vmatpush1.msra.mxu0 %v1663
    %1697 = vmatprep.subr.mxu0 0.0
    %1698 = vmatpush1.msra.mxu0 0.0
    %1699 = vmatprep.subr.mxu0 0.0
    %1700 = vmatpush1.msra.mxu0 0.0
    %1701 = vmatprep.subr.mxu0 0.0
    %1702 = vmatpush1.msra.mxu0 0.0
    %1703 = vmatprep.subr.mxu0 0.0
    %1704 = vmatpush1.msra.mxu0 0.0
    %1705 = vmatprep.subr.mxu0 0.0
    %1706 = vmatpush1.msra.mxu0 0.0
    %1707 = vmatprep.subr.mxu0 0.0
    %1708 = vmatpush1.msra.mxu0 0.0
    %1709 = vmatprep.subr.mxu0 0.0
    %1710 = vmatpush1.msra.mxu0 0.0
    %1711 = vmatprep.subr.mxu0 0.0
    %1712 = vmatpush1.msra.mxu0 0.0
    %1713 = vmatprep.subr.mxu0 0.0
    %1714 = vmatpush1.msra.mxu0 0.0
    %1715 = vmatprep.subr.mxu0 0.0
    %1716 = vmatpush1.msra.mxu0 0.0
    %1717 = vmatprep.subr.mxu0 0.0
    %1718 = vmatpush1.msra.mxu0 0.0
    %1719 = vmatprep.subr.mxu0 0.0
    %1720 = vmatpush1.msra.mxu0 0.0
    %1721 = vmatprep.subr.mxu0 0.0
    %1722 = vmatpush1.msra.mxu0 0.0
    %1723 = vmatprep.subr.mxu0 0.0
    %1724 = vmatpush1.msra.mxu0 0.0
    %1725 = vmatprep.subr.mxu0 0.0
    %1726 = vmatpush1.msra.mxu0 0.0
    %1727 = vmatprep.subr.mxu0 0.0
    %1728 = vmatpush1.msra.mxu0 0.0
    %1729 = vmatprep.mubr.f32.mxu0 0.0
    %1730 = vmatmul.mubr.f32.gmra.mrb[0].mxu0 %v1617
    %v1731 = vpop.f32.mrb[0].mxu0
    %v1732 = vadd.f32 %v1664, %v1731
    %v1733 = vpop.f32.mrb[0].mxu0
    %1734 = vdwg.mxu0
    %v1735 = vmul.f32 %v1377, %v1630
    %v1736 = vadd.f32 %v1732, %v1735
    %v1737 = vmax.f32 %v1630, 0.0
    %v1738 = vmin.f32 %v1737, 1.0
    %v1739 = vld [vmem:[%s10 + $0x5] sm:$0x1]
    %v1740 = vmul.f32 %v1739, %v923
    %v1741 = vmul.f32 %v1262, %v1738
    %v1742 = vmul.f32 %v1264, %v1736
    %v1743 = vsub.f32 1.0, %v1738
    %v1744 = vmul.f32 %v1742, %v1743
    %v1745 = vadd.f32 %v1741, %v1744
    %v1746 = vadd.f32 %v1745, %v1740
    %v1747 = vmax.f32 %v1746, 0.0
    %v1748 = vmin.f32 %v1747, 1.0
    %v1749 = vsel %vm916, %v1748, %v1738
    %v1750 = vmax.f32 %v1749, 0.0
    %v1751 = vmin.f32 %v1750, 1.0
    %v1753 = vrot.slane %v1381, 7
    %v1756 = vrot.slane %v1500, 6
    %v1759 = vrot.slane %v1619, 5
    %v1762 = vrot.slane %v1738, 4
    %v1765 = vrot.slane %v1751, 3
    %vm1767 = vcmask 1040384
    %v1768 = vsel %vm1767, %v1251, %v1753
    %vm1769 = vcmask 1041408
    %v1770 = vsel %vm1769, %v1768, %v1756
    %vm1771 = vcmask 1042432
    %v1772 = vsel %vm1771, %v1770, %v1759
    %vm1773 = vcmask 1043456
    %v1774 = vsel %vm1773, %v1772, %v1762
    %vm1775 = vcmask 1044480
    %v1776 = vsel %vm1775, %v1774, %v1765
    %1777 = vst [vmem:[#allocation8] sm:$0x3f] %v1776
    // Predicated region
    $region62: #{tpu_custom_call.1} parent=1 // pred_check
      _
    $region63: #{tpu_custom_call.1} parent=1 // pred_check_branch
      %1779 = sbr.rel (0) target = $region65
    $region64: #{tpu_custom_call.1} parent=1 // pred_region
      %s1781 = ssub.s32 128, 128
      %1782 = vsyncadd [#allocation5], %s1781
      %s1784 = sshll.u32 [#allocation8], 4
      %s1785 = int_to_ptr.vmem [resolvable:$true] %s1784
      %1787 = dma.vmem_to_hbm [thread:$0]  %s1785, 128, %s13, [#allocation5]
    $region65: #{tpu_custom_call.1} parent=1 // pred_fallthru
      _
    // Predicated region
    $region66: #{tpu_custom_call.1} parent=1 // pred_check
      _
    $region67: #{tpu_custom_call.1} parent=1 // pred_check_branch
      %1789 = sbr.rel (0) target = $region69
    $region68: #{tpu_custom_call.1} parent=1 // pred_region
      %s1791 = ssub.s32 16, 16
      %1792 = vsyncadd [#allocation10], %s1791
      %s1794 = sshll.u32 [#allocation9], 4
      %s1795 = int_to_ptr.vmem [resolvable:$true] %s1794
      %1797 = dma.vmem_to_hbm [thread:$0]  %s1795, 16, %s14, [#allocation10]
    $region69: #{tpu_custom_call.1} parent=1 // pred_fallthru
      _
    // Predicated region
    $region70: #{tpu_custom_call.1} parent=1 // pred_check
      _
    $region71: #{tpu_custom_call.1} parent=1 // pred_check_branch
      %1799 = sbr.rel (0) target = $region73
    $region72: #{tpu_custom_call.1} parent=1 // pred_region
      %1800 = dma.done [#allocation5], 128
    $region73: #{tpu_custom_call.1} parent=1 // pred_fallthru
      _
    // Predicated region
    $region74: #{tpu_custom_call.1} parent=1 // pred_check
      _
    $region75: #{tpu_custom_call.1} parent=1 // pred_check_branch
      %1802 = sbr.rel (0) target = $region77
    $region76: #{tpu_custom_call.1} parent=1 // pred_region
      %1803 = dma.done [#allocation10], 16
    $region77: #{tpu_custom_call.1} parent=1 // pred_fallthru
      _
    %1804 = vsyncpa [#allocation4], 1
    %1805 = vsyncpa [#allocation5], 1
    %1806 = vsyncpa [#allocation10], 1
    %1807 = vsyncpa [#allocation6], 1

</llo_original>
